<compile_context>
chip_gen: v6e
topology: v6e:2x2x1
jax: 0.10.0
libtpu: 0.0.40
codegen_flags: <defaults>
</compile_context>

<pallas_src>
import functools

import jax
import jax.numpy as jnp
from jax.experimental import pallas as pl
from jax.experimental.pallas import tpu as pltpu


def _round_up(x, m):
    return (x + m - 1) // m * m


# ---------------------------------------------------------------------------
# Kernel 1: streaming global-average-pool over the spatial (H*W) axis.
#   Reads blocks of x.reshape(N, C, HW) for the selected rows only and writes
#   pooled means of shape (M, C, 1).
# ---------------------------------------------------------------------------
def _pool_kernel(img_ref, pooled_ref, *, hw, hw_tile, inv_hw, need_mask):
    k = pl.program_id(1)

    @pl.when(k == 0)
    def _():
        pooled_ref[...] = jnp.zeros_like(pooled_ref)

    # Upcast per tile (no-op for f32 inputs; keeps bf16/int8 sources in native
    # dtype on the HBM side).
    tile = img_ref[...].astype(jnp.float32)                    # (C, hw_tile)

    if need_mask:
        # Mask lanes past HW (only the last HW step can be out of bounds; the
        # formula is globally correct so it is applied unconditionally — the
        # few VPU ops hide under the pipelined DMA).
        lane = jax.lax.broadcasted_iota(jnp.int32, tile.shape, 1)
        tile = jnp.where(k * hw_tile + lane < hw, tile, 0.0)

    # Per-step cross-lane partial reduce (XLU slot, free while DMA-bound) into
    # the resident output accumulator — no full-tile scratch needed.
    pooled_ref[...] += jnp.sum(tile, axis=-1, keepdims=True)

    @pl.when(k == pl.num_programs(1) - 1)
    def _():
        pooled_ref[...] = pooled_ref[...] * inv_hw


# ---------------------------------------------------------------------------
# Kernel 2: backbone stand-in projection + FC head + L2 normalize (grid-less,
# everything resident in VMEM; negligible work).
# ---------------------------------------------------------------------------
def _head_kernel(pooled_ref, wb_ref, bb_ref, w1_ref, b1_ref, w2_ref, b2_ref,
                 pred_ref):
    n_chan = wb_ref.shape[0]

    p_img = pooled_ref[...][:, :, 0]                           # (M, C)

    # Backbone stand-in: GAP + Linear(C, 256). K == C (=3) is far below MXU
    # width, so use VPU broadcast FMAs instead of an MXU pass.
    feats = bb_ref[...] + p_img[:, 0:1] * wb_ref[0:1, :]
    for c in range(1, n_chan):
        feats = feats + p_img[:, c:c + 1] * wb_ref[c:c + 1, :]  # (M, 256)

    # FC head: Linear(256,128) -> Sigmoid -> Linear(128,3) -> Sigmoid.
    h = jax.nn.sigmoid(
        jnp.dot(feats, w1_ref[...], preferred_element_type=jnp.float32)
        + b1_ref[...])
    out = jax.nn.sigmoid(
        jnp.dot(h, w2_ref[...], preferred_element_type=jnp.float32)
        + b2_ref[...])

    # L2 normalize along dim=1 (torch.nn.functional.normalize, eps=1e-12);
    # rsqrt goes to the otherwise-idle EUP slot.
    sq = jnp.sum(out * out, axis=1, keepdims=True)
    pred_ref[...] = out * jax.lax.rsqrt(jnp.maximum(sq, 1e-24))


def fc4_forward(x, y, params, *, hw_tile_cap=None):
    """x: (N, C, H, W); y unused (matches FC4.forward signature)."""
    del y
    N, C, H, W = x.shape
    # FC4.forward indexes pred1[arange(0, N, 3) + 1]; N % 3 == 1 would be an
    # out-of-bounds index in PyTorch, so reject it instead of silently clamping.
    assert N >= 2 and N % 3 != 1, "FC4.forward would index row N when N % 3 == 1"

    M = (N + 2) // 3                     # number of returned rows (1, 4, 7, ...)
    HW = H * W

    # Free, layout-preserving reshape; NO strided gather, NO padding pass.
    x3d = x.reshape(N, C, HW)

    # ---- Per-generation VMEM budget -> block sizing ------------------------
    try:
        vmem_cap = int(pltpu.get_tpu_info().vmem_capacity_bytes)
    except Exception:
        vmem_cap = 64 * 1024 * 1024      # conservative (v7x per-TC physical)

    sub_rows = _round_up(C, 8)           # sublane-padded channel rows per block
    budget = vmem_cap // 8               # pipeline budget with plenty of headroom
    max_hw_tile = max((budget // (2 * sub_rows * 4)) // 128 * 128, 128)
    hw_tile = min(_round_up(HW, 128), max_hw_tile)
    if hw_tile_cap is not None:
        hw_tile = max(min(hw_tile, _round_up(hw_tile_cap, 128)), 128)
    num_k = -(-HW // hw_tile)
    need_mask = (HW % hw_tile) != 0
    vmem_limit_bytes = int(min(vmem_cap // 2, 64 * 1024 * 1024))

    wb, bb, w1, b1, w2, b2 = params

    # ---- Kernel 1: streaming spatial pooling (selection folded in) ---------
    pooled = pl.pallas_call(
        functools.partial(_pool_kernel, hw=HW, hw_tile=hw_tile,
                          inv_hw=1.0 / float(HW), need_mask=need_mask),
        out_shape=jax.ShapeDtypeStruct((M, C, 1), jnp.float32),
        grid=(M, num_k),
        in_specs=[pl.BlockSpec((None, C, hw_tile),
                               lambda m, k: (3 * m + 1, 0, k))],
        out_specs=pl.BlockSpec((None, C, 1), lambda m, k: (m, 0, 0)),
        compiler_params=pltpu.CompilerParams(
            dimension_semantics=("parallel", "arbitrary"),
            vmem_limit_bytes=vmem_limit_bytes),
    )(x3d)

    # ---- Kernel 2: backbone stand-in + FC head + L2 normalize --------------
    vmem = pl.BlockSpec(memory_space=pltpu.MemorySpace.VMEM)
    pred = pl.pallas_call(
        _head_kernel,
        out_shape=jax.ShapeDtypeStruct((M, 3), jnp.float32),
        in_specs=[vmem] * 7,
        out_specs=vmem,
    )(pooled, wb, bb, w1, b1, w2, b2)

    return pred


def init_params(key, in_channels):
    """Deterministic synthetic parameters (no checkpoint available)."""
    k = jax.random.split(key, 5)
    wb = jax.random.normal(k[0], (in_channels, 256), jnp.float32) * 0.1
    bb = jnp.zeros((1, 256), jnp.float32)
    w1 = jax.random.normal(k[1], (256, 128), jnp.float32) * 0.05
    b1 = jax.random.normal(k[2], (1, 128), jnp.float32) * 0.01
    w2 = jax.random.normal(k[3], (128, 3), jnp.float32) * 0.05
    b2 = jax.random.normal(k[4], (1, 3), jnp.float32) * 0.01
    return (wb, bb, w1, b1, w2, b2)


if __name__ == "__main__":
    key = jax.random.PRNGKey(0)
    kx, ky, kp = jax.random.split(key, 3)

    # Batch of 6 (stride-3 select keeps rows 1 and 4); 3-channel 20x20 images
    # -> HW = 400.  hw_tile_cap=128 forces 4 HW steps with a masked 16-element
    # tail, exercising accumulation + the in-kernel tail mask.
    N, C, H, W = 6, 3, 20, 20
    x = jax.random.normal(kx, (N, C, H, W), jnp.float32)
    y = jax.random.normal(ky, (N, C, H, W), jnp.float32)  # unused per forward()
    params = init_params(kp, C)

    fwd = jax.jit(functools.partial(fc4_forward, hw_tile_cap=128))
    pred = jax.block_until_ready(fwd(x, y, params))

    M = (N + 2) // 3
    assert pred.shape == (M, 3), pred.shape

    # Pure-JAX reference of the same forward (same backbone stand-in).
    wb, bb, w1, b1, w2, b2 = params
    p_ref = x[1::3].astype(jnp.float32).mean(axis=(2, 3))            # (M, C)
    feats = p_ref @ wb + bb
    h = jax.nn.sigmoid(feats @ w1 + b1)
    out = jax.nn.sigmoid(h @ w2 + b2)
    ref = out / jnp.maximum(jnp.linalg.norm(out, axis=1, keepdims=True), 1e-12)
    assert jnp.allclose(pred, ref, atol=1e-4, rtol=1e-4), (pred, ref)

    # Sanity: rows of pred are L2-normalized.
    norms = jnp.linalg.norm(pred, axis=1)
    assert jnp.allclose(norms, 1.0, atol=1e-5), norms

    print("KERNEL_OK")
</pallas_src>

<mosaic_0001>
module attributes {stable_mosaic.version = 11 : i64} {
  func.func @_head_kernel(%arg0: memref<2x3x1xf32, #tpu.memory_space<vmem>>, %arg1: memref<3x256xf32, #tpu.memory_space<vmem>>, %arg2: memref<1x256xf32, #tpu.memory_space<vmem>>, %arg3: memref<256x128xf32, #tpu.memory_space<vmem>>, %arg4: memref<1x128xf32, #tpu.memory_space<vmem>>, %arg5: memref<128x3xf32, #tpu.memory_space<vmem>>, %arg6: memref<1x3xf32, #tpu.memory_space<vmem>>, %arg7: memref<2x3xf32, #tpu.memory_space<vmem>>) attributes {dimension_semantics = [], scalar_prefetch = 0 : i64, scratch_operands = 0 : i64, tpu.core_type = #tpu.core_type<tc>} {
    %c0 = arith.constant 0 : index
    %c0_0 = arith.constant 0 : index
    %c0_1 = arith.constant 0 : index
    %0 = vector.load %arg0[%c0, %c0_0, %c0_1] : memref<2x3x1xf32, #tpu.memory_space<vmem>>, vector<2x3x1xf32>
    %1 = vector.shape_cast %0 : vector<2x3x1xf32> to vector<2x3xf32>
    %c0_2 = arith.constant 0 : index
    %c0_3 = arith.constant 0 : index
    %2 = vector.load %arg2[%c0_2, %c0_3] : memref<1x256xf32, #tpu.memory_space<vmem>>, vector<1x256xf32>
    %3 = vector.extract_strided_slice %1 {offsets = [0, 0], sizes = [2, 1], strides = [1, 1]} : vector<2x3xf32> to vector<2x1xf32>
    %c0_4 = arith.constant 0 : index
    %c0_5 = arith.constant 0 : index
    %4 = vector.load %arg1[%c0_4, %c0_5] : memref<3x256xf32, #tpu.memory_space<vmem>>, vector<1x256xf32>
    %5 = vector.broadcast %3 : vector<2x1xf32> to vector<2x256xf32>
    %6 = vector.broadcast %4 : vector<1x256xf32> to vector<2x256xf32>
    %7 = arith.mulf %5, %6 : vector<2x256xf32>
    %8 = vector.broadcast %2 : vector<1x256xf32> to vector<2x256xf32>
    %9 = arith.addf %8, %7 : vector<2x256xf32>
    %10 = vector.extract_strided_slice %1 {offsets = [0, 1], sizes = [2, 1], strides = [1, 1]} : vector<2x3xf32> to vector<2x1xf32>
    %c1 = arith.constant 1 : index
    %c0_6 = arith.constant 0 : index
    %11 = vector.load %arg1[%c1, %c0_6] : memref<3x256xf32, #tpu.memory_space<vmem>>, vector<1x256xf32>
    %12 = vector.broadcast %10 : vector<2x1xf32> to vector<2x256xf32>
    %13 = vector.broadcast %11 : vector<1x256xf32> to vector<2x256xf32>
    %14 = arith.mulf %12, %13 : vector<2x256xf32>
    %15 = arith.addf %9, %14 : vector<2x256xf32>
    %16 = vector.extract_strided_slice %1 {offsets = [0, 2], sizes = [2, 1], strides = [1, 1]} : vector<2x3xf32> to vector<2x1xf32>
    %c2 = arith.constant 2 : index
    %c0_7 = arith.constant 0 : index
    %17 = vector.load %arg1[%c2, %c0_7] : memref<3x256xf32, #tpu.memory_space<vmem>>, vector<1x256xf32>
    %18 = vector.broadcast %16 : vector<2x1xf32> to vector<2x256xf32>
    %19 = vector.broadcast %17 : vector<1x256xf32> to vector<2x256xf32>
    %20 = arith.mulf %18, %19 : vector<2x256xf32>
    %21 = arith.addf %15, %20 : vector<2x256xf32>
    %c0_8 = arith.constant 0 : index
    %c0_9 = arith.constant 0 : index
    %22 = vector.load %arg3[%c0_8, %c0_9] : memref<256x128xf32, #tpu.memory_space<vmem>>, vector<256x128xf32>
    %cst = arith.constant dense<0.000000e+00> : vector<2x128xf32>
    %23 = tpu.matmul %21, %22, %cst {dimension_numbers = #tpu.dot_dimension_numbers<[1], [0], [0], [1], [0, 0, 1, 1], [], []>} : vector<2x256xf32>, vector<256x128xf32>, vector<2x128xf32> -> vector<2x128xf32>
    %c0_10 = arith.constant 0 : index
    %c0_11 = arith.constant 0 : index
    %24 = vector.load %arg4[%c0_10, %c0_11] : memref<1x128xf32, #tpu.memory_space<vmem>>, vector<1x128xf32>
    %25 = vector.broadcast %24 : vector<1x128xf32> to vector<2x128xf32>
    %26 = arith.addf %23, %25 : vector<2x128xf32>
    %27 = arith.negf %26 : vector<2x128xf32>
    %28 = math.exp %27 : vector<2x128xf32>
    %cst_12 = arith.constant 1.000000e+00 : f32
    %29 = vector.broadcast %cst_12 : f32 to vector<2x128xf32>
    %30 = arith.addf %29, %28 : vector<2x128xf32>
    %31 = arith.divf %29, %30 : vector<2x128xf32>
    %c0_13 = arith.constant 0 : index
    %c0_14 = arith.constant 0 : index
    %32 = vector.load %arg5[%c0_13, %c0_14] : memref<128x3xf32, #tpu.memory_space<vmem>>, vector<128x3xf32>
    %cst_15 = arith.constant dense<0.000000e+00> : vector<2x3xf32>
    %33 = tpu.matmul %31, %32, %cst_15 {dimension_numbers = #tpu.dot_dimension_numbers<[1], [0], [0], [1], [0, 0, 1, 1], [], []>} : vector<2x128xf32>, vector<128x3xf32>, vector<2x3xf32> -> vector<2x3xf32>
    %c0_16 = arith.constant 0 : index
    %c0_17 = arith.constant 0 : index
    %34 = vector.load %arg6[%c0_16, %c0_17] : memref<1x3xf32, #tpu.memory_space<vmem>>, vector<1x3xf32>
    %35 = vector.broadcast %34 : vector<1x3xf32> to vector<2x3xf32>
    %36 = arith.addf %33, %35 : vector<2x3xf32>
    %37 = arith.negf %36 : vector<2x3xf32>
    %38 = math.exp %37 : vector<2x3xf32>
    %cst_18 = arith.constant 1.000000e+00 : f32
    %39 = vector.broadcast %cst_18 : f32 to vector<2x3xf32>
    %40 = arith.addf %39, %38 : vector<2x3xf32>
    %41 = arith.divf %39, %40 : vector<2x3xf32>
    %42 = arith.mulf %41, %41 : vector<2x3xf32>
    %cst_19 = arith.constant dense<0.000000e+00> : vector<2xf32>
    %43 = vector.multi_reduction <add>, %42, %cst_19 [1] : vector<2x3xf32> to vector<2xf32>
    %44 = vector.shape_cast %43 : vector<2xf32> to vector<2x1xf32>
    %cst_20 = arith.constant 1.000000e-24 : f32
    %45 = vector.broadcast %cst_20 : f32 to vector<2x1xf32>
    %46 = arith.maximumf %44, %45 : vector<2x1xf32>
    %47 = math.rsqrt %46 : vector<2x1xf32>
    %48 = vector.broadcast %47 : vector<2x1xf32> to vector<2x3xf32>
    %49 = arith.mulf %41, %48 : vector<2x3xf32>
    %c0_21 = arith.constant 0 : index
    %c0_22 = arith.constant 0 : index
    %50 = vector.load %arg7[%c0_21, %c0_22] : memref<2x3xf32, #tpu.memory_space<vmem>>, vector<2x3xf32>
    tpu.vector_store %arg7[%c0_21, %c0_22], %49 {strides = array<i32>} : memref<2x3xf32, #tpu.memory_space<vmem>>, vector<2x3xf32>,
    return
  }
}

module attributes {stable_mosaic.version = 11 : i64} {
  func.func @_pool_kernel(%arg0: i32, %arg1: i32, %arg2: memref<1x3x128xf32, #tpu.memory_space<vmem>>, %arg3: memref<1x3x1xf32, #tpu.memory_space<vmem>>) attributes {dimension_semantics = [#tpu.dimension_semantics<parallel>, #tpu.dimension_semantics<arbitrary>], iteration_bounds = array<i64: 2, 4>, scalar_prefetch = 0 : i64, scratch_operands = 0 : i64, tpu.core_type = #tpu.core_type<tc>, window_params = [{transform_indices = @transform_0, window_bounds = array<i64: 1, 3, 128>}, {transform_indices = @transform_1, window_bounds = array<i64: 1, 3, 1>}]} {
    %c0_i32 = arith.constant 0 : i32
    %0 = arith.cmpi eq, %arg1, %c0_i32 : i32
    %1 = arith.extui %0 : i1 to i32
    %c0_i32_0 = arith.constant 0 : i32
    %2 = arith.cmpi ne, %1, %c0_i32_0 : i32
    scf.if %2 {
      %cst_11 = arith.constant 0.000000e+00 : f32
      %24 = vector.broadcast %cst_11 : f32 to vector<3x1xf32>
      %c0_12 = arith.constant 0 : index
      %c0_13 = arith.constant 0 : index
      %c0_14 = arith.constant 0 : index
      %25 = vector.load %arg3[%c0_12, %c0_13, %c0_14] : memref<1x3x1xf32, #tpu.memory_space<vmem>>, vector<1x3x1xf32>
      %26 = vector.shape_cast %25 : vector<1x3x1xf32> to vector<3x1xf32>
      %27 = vector.shape_cast %24 : vector<3x1xf32> to vector<1x3x1xf32>
      tpu.vector_store %arg3[%c0_12, %c0_13, %c0_14], %27 {strides = array<i32>} : memref<1x3x1xf32, #tpu.memory_space<vmem>>, vector<1x3x1xf32>,
    } else {
    }
    %c0 = arith.constant 0 : index
    %c0_1 = arith.constant 0 : index
    %c0_2 = arith.constant 0 : index
    %3 = vector.load %arg2[%c0, %c0_1, %c0_2] : memref<1x3x128xf32, #tpu.memory_space<vmem>>, vector<1x3x128xf32>
    %4 = vector.shape_cast %3 : vector<1x3x128xf32> to vector<3x128xf32>
    %5 = tpu.iota {dimensions = array<i32: 1>} : vector<3x128xi32>
    %c128_i32 = arith.constant 128 : i32
    %6 = arith.muli %arg1, %c128_i32 : i32
    %7 = vector.broadcast %6 : i32 to vector<3x128xi32>
    %8 = arith.addi %7, %5 : vector<3x128xi32>
    %c400_i32 = arith.constant 400 : i32
    %9 = vector.broadcast %c400_i32 : i32 to vector<3x128xi32>
    %10 = arith.cmpi slt, %8, %9 : vector<3x128xi32>
    %cst = arith.constant 0.000000e+00 : f32
    %11 = vector.broadcast %cst : f32 to vector<3x128xf32>
    %12 = arith.select %10, %4, %11 : vector<3x128xi1>, vector<3x128xf32>
    %c0_3 = arith.constant 0 : index
    %c0_4 = arith.constant 0 : index
    %c0_5 = arith.constant 0 : index
    %13 = vector.load %arg3[%c0_3, %c0_4, %c0_5] : memref<1x3x1xf32, #tpu.memory_space<vmem>>, vector<1x3x1xf32>
    %14 = vector.shape_cast %13 : vector<1x3x1xf32> to vector<3x1xf32>
    %cst_6 = arith.constant dense<0.000000e+00> : vector<3xf32>
    %15 = vector.multi_reduction <add>, %12, %cst_6 [1] : vector<3x128xf32> to vector<3xf32>
    %16 = vector.shape_cast %15 : vector<3xf32> to vector<3x1xf32>
    %17 = arith.addf %14, %16 : vector<3x1xf32>
    %c0_7 = arith.constant 0 : index
    %c0_8 = arith.constant 0 : index
    %c0_9 = arith.constant 0 : index
    %18 = vector.load %arg3[%c0_7, %c0_8, %c0_9] : memref<1x3x1xf32, #tpu.memory_space<vmem>>, vector<1x3x1xf32>
    %19 = vector.shape_cast %18 : vector<1x3x1xf32> to vector<3x1xf32>
    %20 = vector.shape_cast %17 : vector<3x1xf32> to vector<1x3x1xf32>
    tpu.vector_store %arg3[%c0_7, %c0_8, %c0_9], %20 {strides = array<i32>} : memref<1x3x1xf32, #tpu.memory_space<vmem>>, vector<1x3x1xf32>,
    %c3_i32 = arith.constant 3 : i32
    %21 = arith.cmpi eq, %arg1, %c3_i32 : i32
    %22 = arith.extui %21 : i1 to i32
    %c0_i32_10 = arith.constant 0 : i32
    %23 = arith.cmpi ne, %22, %c0_i32_10 : i32
    scf.if %23 {
      %c0_11 = arith.constant 0 : index
      %c0_12 = arith.constant 0 : index
      %c0_13 = arith.constant 0 : index
      %24 = vector.load %arg3[%c0_11, %c0_12, %c0_13] : memref<1x3x1xf32, #tpu.memory_space<vmem>>, vector<1x3x1xf32>
      %25 = vector.shape_cast %24 : vector<1x3x1xf32> to vector<3x1xf32>
      %cst_14 = arith.constant 2.500000e-03 : f32
      %26 = vector.broadcast %cst_14 : f32 to vector<3x1xf32>
      %27 = arith.mulf %25, %26 : vector<3x1xf32>
      %c0_15 = arith.constant 0 : index
      %c0_16 = arith.constant 0 : index
      %c0_17 = arith.constant 0 : index
      %28 = vector.load %arg3[%c0_15, %c0_16, %c0_17] : memref<1x3x1xf32, #tpu.memory_space<vmem>>, vector<1x3x1xf32>
      %29 = vector.shape_cast %28 : vector<1x3x1xf32> to vector<3x1xf32>
      %30 = vector.shape_cast %27 : vector<3x1xf32> to vector<1x3x1xf32>
      tpu.vector_store %arg3[%c0_15, %c0_16, %c0_17], %30 {strides = array<i32>} : memref<1x3x1xf32, #tpu.memory_space<vmem>>, vector<1x3x1xf32>,
    } else {
    }
    return
  }
  func.func @transform_0(%arg0: i32, %arg1: i32) -> (i32, i32, i32) {
    %c3_i32 = arith.constant 3 : i32
    %0 = arith.muli %c3_i32, %arg0 : i32
    %c1_i32 = arith.constant 1 : i32
    %1 = arith.addi %0, %c1_i32 : i32
    %c0_i32 = arith.constant 0 : i32
    %c0_i32_0 = arith.constant 0 : i32
    return %1, %c0_i32, %arg1 : i32, i32, i32
  }
  func.func @transform_1(%arg0: i32, %arg1: i32) -> (i32, i32, i32) {
    %c0_i32 = arith.constant 0 : i32
    %c0_i32_0 = arith.constant 0 : i32
    %c0_i32_1 = arith.constant 0 : i32
    return %arg0, %c0_i32, %c0_i32_0 : i32, i32, i32
  }
}

</mosaic_0001>

<llo_original>
// kernel: fc4_forward.2
$region0: #{fc4_forward.2}
  #allocation0 [shape = 'u32[]', space=smem, size = 0x4, offset = 0x4, fixed_abs, tag = 'smem constant byte address 0x4 - core index']
  #allocation1 [shape = 'u32[144,128]{1,0:T(1,128)}', space=vmem, size = 0x12000, scoped, tag = 'internal scratch']
  %s0 = inlined_call_operand.vmem [shape: f32[6,3,400], index: 0, kind: input, shape index: {}]
  %s1 = inlined_call_operand.vmem [shape: f32[2,3,1], index: 1, kind: output, shape index: {}]
  %s2 = sld [smem:[#allocation0]]
  $region45: #{fc4_forward.2} parent=0
    _
  %s4 = ssub.s32 1, %s2
  %s5 = scalar_select 0, %s4, %s2
  loop: start=0, step=1, limit=10
  $region2: #{fc4_forward.2} parent=0 // loop_pre_header
    _
  $region3: #{fc4_forward.2} parent=0 // loop_header
    %s7 = sphi 0, %s11
    %p8 = scmp.ge.s32.totalorder %s7, 10
    %s14 = sphi 0, %s26
    %s15 = sphi 0, %s22
    %s16 = sphi 0, %s14
    %s17 = sphi 0, %s15
    %s18 = sphi 0, %s16
    %s19 = sphi 0, %s17
    %s35 = sphi 0, %s37
    %s38 = sphi 0, %s35
    %s39 = sphi 0, %s38
    %s55 = sphi 0, %s39
    %s61 = sphi 0, %s63
    %s64 = sphi 0, %s61
    %s65 = sphi 0, %s64
    %s81 = sphi 0, %s65
  $region4: #{fc4_forward.2} parent=0 // loop_header_branch
    %10 = sbr.rel (%p8) target = $region8
  $region5: #{fc4_forward.2} parent=0 // loop_body
    %s12 = ssub.s32 %s7, 1
    %s13 = ssub.s32 %s7, 2
    %s20 = sadd.s32 1, %s15
    %p21 = scmp.ge.s32.totalorder %s20, 4
    %s22 = scalar_select %p21, 0, %s20
    %s23 = sadd.s32 1, %s14
    %s24 = scalar_select %p21, %s23, %s14
    %p25 = scmp.ge.s32.totalorder %s24, 2
    %s26 = scalar_select %p25, 0, %s24
    %s27 = smul.u32 %s14, 3
    %s28 = sadd.s32 %s27, 1
    %s29 = smul.u32 %s26, 3
    %s30 = sadd.s32 %s29, 1
    %s31 = ssub.s32 %s28, %s30
    %s32 = ssub.s32 %s15, %s22
    %s33 = sor.u32 %s31, %s32
    %p34 = scmp.eq.s32.totalorder %s33, 0
    %s36 = sadd.s32 %s35, 1
    %s37 = scalar_select %p34, %s35, %s36
    %p40 = pneg %p34
    %p41 = scmp.eq.s32.totalorder %s7, 7
    %p42 = por %p40, %p41
    %p43 = scmp.ne.s32.totalorder %s35, %s38
    %p44 = scmp.eq.s32.totalorder %s7, 0
    %p45 = por %p43, %p44
    %p46 = scmp.ne.s32.totalorder %s35, %s38
    %p47 = scmp.eq.s32.totalorder %s12, 7
    %p48 = por %p46, %p47
    %p49 = scmp.ne.s32.totalorder %s38, %s39
    %p50 = scmp.eq.s32.totalorder %s12, 0
    %p51 = por %p49, %p50
    %p52 = scmp.ne.s32.totalorder %s38, %s39
    %p53 = scmp.eq.s32.totalorder %s13, 7
    %p54 = por %p52, %p53
    %p56 = scmp.ne.s32.totalorder %s39, %s55
    %p57 = scmp.eq.s32.totalorder %s13, 0
    %p58 = por %p56, %p57
    %s59 = ssub.s32 %s14, %s26
    %p60 = scmp.eq.s32.totalorder %s59, 0
    %s62 = sadd.s32 %s61, 1
    %s63 = scalar_select %p60, %s61, %s62
    %p66 = pneg %p60
    %p67 = scmp.eq.s32.totalorder %s7, 7
    %p68 = por %p66, %p67
    %p69 = scmp.ne.s32.totalorder %s61, %s64
    %p70 = scmp.eq.s32.totalorder %s7, 0
    %p71 = por %p69, %p70
    %p72 = scmp.ne.s32.totalorder %s61, %s64
    %p73 = scmp.eq.s32.totalorder %s12, 7
    %p74 = por %p72, %p73
    %p75 = scmp.ne.s32.totalorder %s64, %s65
    %p76 = scmp.eq.s32.totalorder %s12, 0
    %p77 = por %p75, %p76
    %p78 = scmp.ne.s32.totalorder %s64, %s65
    %p79 = scmp.eq.s32.totalorder %s13, 7
    %p80 = por %p78, %p79
    %p82 = scmp.ne.s32.totalorder %s65, %s81
    %p83 = scmp.eq.s32.totalorder %s13, 0
    %p84 = por %p82, %p83
    %p85 = scmp.le.s32.totalorder 1, %s7
    %p86 = scmp.lt.s32.totalorder %s7, 9
    %p87 = pnand %p85, %p86
    %p88 = pneg %p87
    // Predicated region
    $region9: #{fc4_forward.2} parent=5 // pred_check
      _
    $region10: #{fc4_forward.2} parent=5 // pred_check_branch
      %90 = sbr.rel (%p87) target = $region12
    $region11: #{fc4_forward.2} parent=5 // pred_region
      %s91 = ssub.s32 %s7, 1
    $region12: #{fc4_forward.2} parent=5 // pred_fallthru
      _
    %p92 = scmp.lt.s32.totalorder %s7, 8
    // Predicated region
    $region13: #{fc4_forward.2} parent=5 // pred_check
      %p93 = pneg %p92
    $region14: #{fc4_forward.2} parent=5 // pred_check_branch
      %95 = sbr.rel (%p93) target = $region16
    $region15: #{fc4_forward.2} parent=5 // pred_region
      // Predicated region
      $region17: #{fc4_forward.2} parent=15 // pred_check
        %p96 = pneg %p45
      $region18: #{fc4_forward.2} parent=15 // pred_check_branch
        %98 = sbr.rel (%p96) target = $region20
      $region19: #{fc4_forward.2} parent=15 // pred_region
        %s99 = smul.u32 %s14, 3
        %s100 = sadd.s32 %s99, 1
        %p101 = scmp.lt.s32.totalorder %s100, 5
        %s102 = scalar_select %p101, %s100, 5
        %p103 = scmp.lt.s32.totalorder %s15, 3
        %s104 = scalar_select %p103, %s15, 3
        %s105 = smul.addr %s102, 4
        %s106 = sadd.s32 %s104, %s105
        %s107 = smul.addr %s106, 4
        %s108 = scalar_lea.vmem %s0, %s107
        %s109 = smul.u32 %s14, 3
        %s110 = sadd.s32 %s109, 1
      $region20: #{fc4_forward.2} parent=15 // pred_fallthru
        _
    $region16: #{fc4_forward.2} parent=5 // pred_fallthru
      _
    %p111 = scmp.le.s32.totalorder 1, %s7
    %p112 = scmp.lt.s32.totalorder %s7, 9
    %p113 = pnand %p111, %p112
    %p114 = pneg %p113
    // Predicated region
    $region21: #{fc4_forward.2} parent=5 // pred_check
      _
    $region22: #{fc4_forward.2} parent=5 // pred_check_branch
      %116 = sbr.rel (%p113) target = $region24
    $region23: #{fc4_forward.2} parent=5 // pred_region
      %s117 = ssub.s32 %s7, 1
      %s118 = smul.u32 %s16, 3
      %s119 = sadd.s32 %s118, 1
      %p120 = scmp.lt.s32.totalorder %s119, 5
      %s121 = scalar_select %p120, %s119, 5
      %p122 = scmp.lt.s32.totalorder %s17, 3
      %s123 = scalar_select %p122, %s17, 3
      %s124 = smul.addr %s121, 4
      %s125 = sadd.s32 %s123, %s124
      %s126 = smul.addr %s125, 4
      %s127 = scalar_lea.vmem %s0, %s126
      %p128 = pneg %p51
      %p129 = pneg %p48
      %p130 = pneg %p77
      %p131 = pneg %p74
      %p132 = scmp.lt.s32.totalorder %s16, 1
      %s133 = scalar_select %p132, %s16, 1
      %s134 = smul.addr %s133, 4
      %s135 = scalar_lea.vmem %s1, %s134
      %s136 = smul.u32 %s16, 3
      %s137 = sadd.s32 %s136, 1
      %p138 = scmp.lt.s32.totalorder %s137, 5
      %s139 = scalar_select %p138, %s137, 5
      %p140 = scmp.lt.s32.totalorder %s17, 3
      %s141 = scalar_select %p140, %s17, 3
      %s142 = smul.addr %s139, 4
      %s143 = sadd.s32 %s141, %s142
      %s144 = smul.addr %s143, 4
      %s145 = scalar_lea.vmem %s0, %s144
      %s146 = smul.u32 %s16, 3
      %s147 = sadd.s32 %s146, 1
      %p148 = scmp.lt.s32.totalorder %s16, 1
      %s149 = scalar_select %p148, %s16, 1
      %s150 = smul.addr %s149, 4
      %s151 = scalar_lea.vmem %s1, %s150
      %p152 = scmp.eq.s32.totalorder %s17, 0
      // Predicated region
      $region25: #{fc4_forward.2} parent=23 // pred_check
        %p153 = pneg %p152
      $region26: #{fc4_forward.2} parent=23 // pred_check_branch
        %155 = sbr.rel (%p153) target = $region28
      $region27: #{fc4_forward.2} parent=23 // pred_region
        %vm156 = vcmask 2048
        %157 = vst.msk [vmem:[%s151] sm:$0x7] %vm156, 0.0
      $region28: #{fc4_forward.2} parent=23 // pred_fallthru
        _
      %v158 = vld [vmem:[%s145] sm:$0x7]
      %v159 = vlaneseq
      %v160 = vand.u32 %v159, 127
      %s161 = smul.u32 %s17, 128
      %v162 = vstv %s161
      %v163 = vadd.s32 %v162, %v160
      %vm164 = vcmp.lt.s32.totalorder %v163, 400
      %v165 = vsel %vm164, %v158, 0.0
      %v166 = vld [vmem:[%s151] sm:$0x7]
      %vm167 = vcmask 1042432
      %v168 = vsel %vm167, %v165, 0.0
      %169 = vadd.xlane.f32.xlu0 %v168
      %v170 = vpop.xlane.xlu0 %169
      %v171 = vadd.f32 %v166, %v170
      %vm172 = vcmask 2048
      %173 = vst.msk [vmem:[%s151] sm:$0x7] %vm172, %v171
      %p174 = scmp.eq.s32.totalorder %s17, 3
      // Predicated region
      $region29: #{fc4_forward.2} parent=23 // pred_check
        %p175 = pneg %p174
      $region30: #{fc4_forward.2} parent=23 // pred_check_branch
        %177 = sbr.rel (%p175) target = $region32
      $region31: #{fc4_forward.2} parent=23 // pred_region
        %v178 = vld [vmem:[%s151] sm:$0x7]
        %v179 = vmul.f32 %v178, 0.0025
        %180 = vst.msk [vmem:[%s151] sm:$0x7] %vm172, %v179
      $region32: #{fc4_forward.2} parent=23 // pred_fallthru
        _
      %p181 = scmp.lt.s32.totalorder %s16, 1
      %s182 = scalar_select %p181, %s16, 1
      %s183 = smul.addr %s182, 4
      %s184 = scalar_lea.vmem %s1, %s183
      // Predicated region
      $region33: #{fc4_forward.2} parent=23 // pred_check
        %p185 = pneg %p74
      $region34: #{fc4_forward.2} parent=23 // pred_check_branch
        %187 = sbr.rel (%p185) target = $region36
      $region35: #{fc4_forward.2} parent=23 // pred_region
        _
      $region36: #{fc4_forward.2} parent=23 // pred_fallthru
        _
    $region24: #{fc4_forward.2} parent=5 // pred_fallthru
      _
    %p188 = scmp.le.s32.totalorder 2, %s7
    // Predicated region
    $region37: #{fc4_forward.2} parent=5 // pred_check
      %p189 = pneg %p188
    $region38: #{fc4_forward.2} parent=5 // pred_check_branch
      %191 = sbr.rel (%p189) target = $region40
    $region39: #{fc4_forward.2} parent=5 // pred_region
      %s192 = ssub.s32 %s7, 2
      // Predicated region
      $region41: #{fc4_forward.2} parent=39 // pred_check
        %p193 = pneg %p80
      $region42: #{fc4_forward.2} parent=39 // pred_check_branch
        %195 = sbr.rel (%p193) target = $region44
      $region43: #{fc4_forward.2} parent=39 // pred_region
        %p196 = scmp.lt.s32.totalorder %s18, 1
        %s197 = scalar_select %p196, %s18, 1
        %s198 = smul.addr %s197, 4
        %s199 = scalar_lea.vmem %s1, %s198
      $region44: #{fc4_forward.2} parent=39 // pred_fallthru
        _
    $region40: #{fc4_forward.2} parent=5 // pred_fallthru
      _
  $region6: #{fc4_forward.2} parent=0 // loop_footer
    %s11 = sadd.s32 1, %s7
  $region7: #{fc4_forward.2} parent=0 // loop_footer_branch
    %6 = sbr.rel target = $region3
  $region8: #{fc4_forward.2} parent=0 // loop_exit
    _

// kernel: fc4_forward.3
$region0: #{fc4_forward.3}
  #allocation0 [shape = 'u32[]', space=smem, size = 0x4, offset = 0x4, fixed_abs, tag = 'smem constant byte address 0x4 - core index']
  #allocation1 [shape = 'u32[144,128]{1,0:T(1,128)}', space=vmem, size = 0x12000, scoped, tag = 'internal scratch']
  %s0 = inlined_call_operand.vmem [shape: f32[2,3,1], index: 0, kind: input, shape index: {}]
  %s1 = inlined_call_operand.vmem [shape: f32[3,256], index: 1, kind: input, shape index: {}]
  %s2 = inlined_call_operand.vmem [shape: f32[1,256], index: 2, kind: input, shape index: {}]
  %s3 = inlined_call_operand.vmem [shape: f32[256,128], index: 3, kind: input, shape index: {}]
  %s4 = inlined_call_operand.vmem [shape: f32[1,128], index: 4, kind: input, shape index: {}]
  %s5 = inlined_call_operand.vmem [shape: f32[128,3], index: 5, kind: input, shape index: {}]
  %s6 = inlined_call_operand.vmem [shape: f32[1,3], index: 6, kind: input, shape index: {}]
  %s7 = inlined_call_operand.hbm [shape: f32[2,3], index: 7, kind: output, shape index: {}]
  %s8 = sld [smem:[#allocation0]]
  $region38: #{fc4_forward.3} parent=0
    _
  %s10 = ssub.s32 1, %s8
  %s11 = scalar_select 0, %s10, %s8
  $region1: #{fc4_forward.3} parent=0
    #allocation2 [shape = 'u8[1024]{0}', space=vmem, size = 0x400, scoped, tag = 'output window, operand 0, single buffered']
    #allocation3 [shape = 's32[1]{0}', space=sflag, size = 0x4, scoped, tag = 'scoped memory for fc4_forward.3']
    %12 = vsyncpa [#allocation3], 0
    // Predicated region
    $region2: #{fc4_forward.3} parent=1 // pred_check
      _
    $region3: #{fc4_forward.3} parent=1 // pred_check_branch
      %14 = sbr.rel (0) target = $region5
    $region4: #{fc4_forward.3} parent=1 // pred_region
      _
    $region5: #{fc4_forward.3} parent=1 // pred_fallthru
      _
    // Predicated region
    $region6: #{fc4_forward.3} parent=1 // pred_check
      _
    $region7: #{fc4_forward.3} parent=1 // pred_check_branch
      %16 = sbr.rel (0) target = $region9
    $region8: #{fc4_forward.3} parent=1 // pred_region
      _
    $region9: #{fc4_forward.3} parent=1 // pred_fallthru
      _
    // Predicated region
    $region10: #{fc4_forward.3} parent=1 // pred_check
      _
    $region11: #{fc4_forward.3} parent=1 // pred_check_branch
      %18 = sbr.rel (0) target = $region13
    $region12: #{fc4_forward.3} parent=1 // pred_region
      _
    $region13: #{fc4_forward.3} parent=1 // pred_fallthru
      _
    // Predicated region
    $region14: #{fc4_forward.3} parent=1 // pred_check
      _
    $region15: #{fc4_forward.3} parent=1 // pred_check_branch
      %20 = sbr.rel (0) target = $region17
    $region16: #{fc4_forward.3} parent=1 // pred_region
      _
    $region17: #{fc4_forward.3} parent=1 // pred_fallthru
      _
    // Predicated region
    $region18: #{fc4_forward.3} parent=1 // pred_check
      _
    $region19: #{fc4_forward.3} parent=1 // pred_check_branch
      %22 = sbr.rel (0) target = $region21
    $region20: #{fc4_forward.3} parent=1 // pred_region
      _
    $region21: #{fc4_forward.3} parent=1 // pred_fallthru
      _
    // Predicated region
    $region22: #{fc4_forward.3} parent=1 // pred_check
      _
    $region23: #{fc4_forward.3} parent=1 // pred_check_branch
      %24 = sbr.rel (0) target = $region25
    $region24: #{fc4_forward.3} parent=1 // pred_region
      _
    $region25: #{fc4_forward.3} parent=1 // pred_fallthru
      _
    // Predicated region
    $region26: #{fc4_forward.3} parent=1 // pred_check
      _
    $region27: #{fc4_forward.3} parent=1 // pred_check_branch
      %26 = sbr.rel (0) target = $region29
    $region28: #{fc4_forward.3} parent=1 // pred_region
      _
    $region29: #{fc4_forward.3} parent=1 // pred_fallthru
      _
    %v27 = vld [vmem:[%s0] sm:$0x7]
    %v28 = vld [vmem:[%s0 + $0x4] sm:$0x7]
    %v29 = vld [vmem:[%s2] sm:$0x3]
    %v30 = vld [vmem:[%s1] ss:$4 sm:$0x3]
    %v31 = vlaneseq
    %v32 = vshrl.u32 %v31, 7
    %v33 = vsub.s32 0, %v32
    %v34 = vrot.slane %v27, %v33
    %v35 = vlaneseq
    %v36 = vshrl.u32 %v35, 7
    %v37 = vsub.s32 0, %v36
    %v38 = vrot.slane %v28, %v37
    %v40 = vlaneseq
    %v41 = vshrl.u32 %v40, 7
    %v42 = vsub.s32 0, %v41
    %v43 = vrot.slane %v30, %v42
    %v44 = vlaneseq
    %v45 = vshrl.u32 %v44, 7
    %v46 = vsub.s32 1, %v45
    %v47 = vrot.slane %v30, %v46
    %49 = vbcast.lane.b32.xlu0 %v43, 256
    %v50 = vpop.permute.xlu0 %49
    %s52 = sor.u32 256, 8
    %53 = vbcast.lane.b32.xlu0 %v43, %s52
    %v54 = vpop.permute.xlu0 %53
    %s56 = sor.u32 256, 16
    %57 = vbcast.lane.b32.xlu0 %v43, %s56
    %v58 = vpop.permute.xlu0 %57
    %s60 = sor.u32 256, 24
    %61 = vbcast.lane.b32.xlu0 %v43, %s60
    %v62 = vpop.permute.xlu0 %61
    %s64 = sor.u32 256, 32
    %65 = vbcast.lane.b32.xlu0 %v43, %s64
    %v66 = vpop.permute.xlu0 %65
    %s68 = sor.u32 256, 40
    %69 = vbcast.lane.b32.xlu0 %v43, %s68
    %v70 = vpop.permute.xlu0 %69
    %s72 = sor.u32 256, 48
    %73 = vbcast.lane.b32.xlu0 %v43, %s72
    %v74 = vpop.permute.xlu0 %73
    %s76 = sor.u32 256, 56
    %77 = vbcast.lane.b32.xlu0 %v43, %s76
    %v78 = vpop.permute.xlu0 %77
    %s80 = sor.u32 256, 64
    %81 = vbcast.lane.b32.xlu0 %v43, %s80
    %v82 = vpop.permute.xlu0 %81
    %s84 = sor.u32 256, 72
    %85 = vbcast.lane.b32.xlu0 %v43, %s84
    %v86 = vpop.permute.xlu0 %85
    %s88 = sor.u32 256, 80
    %89 = vbcast.lane.b32.xlu0 %v43, %s88
    %v90 = vpop.permute.xlu0 %89
    %s92 = sor.u32 256, 88
    %93 = vbcast.lane.b32.xlu0 %v43, %s92
    %v94 = vpop.permute.xlu0 %93
    %s96 = sor.u32 256, 96
    %97 = vbcast.lane.b32.xlu0 %v43, %s96
    %v98 = vpop.permute.xlu0 %97
    %s100 = sor.u32 256, 104
    %101 = vbcast.lane.b32.xlu0 %v43, %s100
    %v102 = vpop.permute.xlu0 %101
    %s104 = sor.u32 256, 112
    %105 = vbcast.lane.b32.xlu0 %v43, %s104
    %v106 = vpop.permute.xlu0 %105
    %s108 = sor.u32 256, 120
    %109 = vbcast.lane.b32.xlu0 %v43, %s108
    %v110 = vpop.permute.xlu0 %109
    %112 = vbcast.lane.b32.xlu0 %v47, 256
    %v113 = vpop.permute.xlu0 %112
    %s115 = sor.u32 256, 8
    %116 = vbcast.lane.b32.xlu0 %v47, %s115
    %v117 = vpop.permute.xlu0 %116
    %s119 = sor.u32 256, 16
    %120 = vbcast.lane.b32.xlu0 %v47, %s119
    %v121 = vpop.permute.xlu0 %120
    %s123 = sor.u32 256, 24
    %124 = vbcast.lane.b32.xlu0 %v47, %s123
    %v125 = vpop.permute.xlu0 %124
    %s127 = sor.u32 256, 32
    %128 = vbcast.lane.b32.xlu0 %v47, %s127
    %v129 = vpop.permute.xlu0 %128
    %s131 = sor.u32 256, 40
    %132 = vbcast.lane.b32.xlu0 %v47, %s131
    %v133 = vpop.permute.xlu0 %132
    %s135 = sor.u32 256, 48
    %136 = vbcast.lane.b32.xlu0 %v47, %s135
    %v137 = vpop.permute.xlu0 %136
    %s139 = sor.u32 256, 56
    %140 = vbcast.lane.b32.xlu0 %v47, %s139
    %v141 = vpop.permute.xlu0 %140
    %s143 = sor.u32 256, 64
    %144 = vbcast.lane.b32.xlu0 %v47, %s143
    %v145 = vpop.permute.xlu0 %144
    %s147 = sor.u32 256, 72
    %148 = vbcast.lane.b32.xlu0 %v47, %s147
    %v149 = vpop.permute.xlu0 %148
    %s151 = sor.u32 256, 80
    %152 = vbcast.lane.b32.xlu0 %v47, %s151
    %v153 = vpop.permute.xlu0 %152
    %s155 = sor.u32 256, 88
    %156 = vbcast.lane.b32.xlu0 %v47, %s155
    %v157 = vpop.permute.xlu0 %156
    %s159 = sor.u32 256, 96
    %160 = vbcast.lane.b32.xlu0 %v47, %s159
    %v161 = vpop.permute.xlu0 %160
    %s163 = sor.u32 256, 104
    %164 = vbcast.lane.b32.xlu0 %v47, %s163
    %v165 = vpop.permute.xlu0 %164
    %s167 = sor.u32 256, 112
    %168 = vbcast.lane.b32.xlu0 %v47, %s167
    %v169 = vpop.permute.xlu0 %168
    %s171 = sor.u32 256, 120
    %172 = vbcast.lane.b32.xlu0 %v47, %s171
    %v173 = vpop.permute.xlu0 %172
    %v206 = vmul.f32 %v34, %v50
    %v207 = vmul.f32 %v34, %v54
    %v208 = vmul.f32 %v34, %v58
    %v209 = vmul.f32 %v34, %v62
    %v210 = vmul.f32 %v34, %v66
    %v211 = vmul.f32 %v34, %v70
    %v212 = vmul.f32 %v34, %v74
    %v213 = vmul.f32 %v34, %v78
    %v214 = vmul.f32 %v34, %v82
    %v215 = vmul.f32 %v34, %v86
    %v216 = vmul.f32 %v34, %v90
    %v217 = vmul.f32 %v34, %v94
    %v218 = vmul.f32 %v34, %v98
    %v219 = vmul.f32 %v34, %v102
    %v220 = vmul.f32 %v34, %v106
    %v221 = vmul.f32 %v34, %v110
    %v222 = vmul.f32 %v34, %v113
    %v223 = vmul.f32 %v34, %v117
    %v224 = vmul.f32 %v34, %v121
    %v225 = vmul.f32 %v34, %v125
    %v226 = vmul.f32 %v34, %v129
    %v227 = vmul.f32 %v34, %v133
    %v228 = vmul.f32 %v34, %v137
    %v229 = vmul.f32 %v34, %v141
    %v230 = vmul.f32 %v34, %v145
    %v231 = vmul.f32 %v34, %v149
    %v232 = vmul.f32 %v34, %v153
    %v233 = vmul.f32 %v34, %v157
    %v234 = vmul.f32 %v34, %v161
    %v235 = vmul.f32 %v34, %v165
    %v236 = vmul.f32 %v34, %v169
    %v237 = vmul.f32 %v34, %v173
    %v238 = vmul.f32 %v38, %v50
    %v239 = vmul.f32 %v38, %v54
    %v240 = vmul.f32 %v38, %v58
    %v241 = vmul.f32 %v38, %v62
    %v242 = vmul.f32 %v38, %v66
    %v243 = vmul.f32 %v38, %v70
    %v244 = vmul.f32 %v38, %v74
    %v245 = vmul.f32 %v38, %v78
    %v246 = vmul.f32 %v38, %v82
    %v247 = vmul.f32 %v38, %v86
    %v248 = vmul.f32 %v38, %v90
    %v249 = vmul.f32 %v38, %v94
    %v250 = vmul.f32 %v38, %v98
    %v251 = vmul.f32 %v38, %v102
    %v252 = vmul.f32 %v38, %v106
    %v253 = vmul.f32 %v38, %v110
    %v254 = vmul.f32 %v38, %v113
    %v255 = vmul.f32 %v38, %v117
    %v256 = vmul.f32 %v38, %v121
    %v257 = vmul.f32 %v38, %v125
    %v258 = vmul.f32 %v38, %v129
    %v259 = vmul.f32 %v38, %v133
    %v260 = vmul.f32 %v38, %v137
    %v261 = vmul.f32 %v38, %v141
    %v262 = vmul.f32 %v38, %v145
    %v263 = vmul.f32 %v38, %v149
    %v264 = vmul.f32 %v38, %v153
    %v265 = vmul.f32 %v38, %v157
    %v266 = vmul.f32 %v38, %v161
    %v267 = vmul.f32 %v38, %v165
    %v268 = vmul.f32 %v38, %v169
    %v269 = vmul.f32 %v38, %v173
    %v271 = vlaneseq
    %v272 = vshrl.u32 %v271, 7
    %v273 = vsub.s32 0, %v272
    %v274 = vrot.slane %v29, %v273
    %v275 = vlaneseq
    %v276 = vshrl.u32 %v275, 7
    %v277 = vsub.s32 1, %v276
    %v278 = vrot.slane %v29, %v277
    %345 = vset.pattern.permute.xlu0 0
    %346 = vperm.xlu0 %345, %v206
    %v347 = vpop.permute.xlu0 %346
    %348 = vset.pattern.permute.xlu0 0
    %349 = vperm.xlu0 %348, %v207
    %v350 = vpop.permute.xlu0 %349
    %351 = vset.pattern.permute.xlu0 0
    %352 = vperm.xlu0 %351, %v208
    %v353 = vpop.permute.xlu0 %352
    %354 = vset.pattern.permute.xlu0 0
    %355 = vperm.xlu0 %354, %v209
    %v356 = vpop.permute.xlu0 %355
    %357 = vset.pattern.permute.xlu0 0
    %358 = vperm.xlu0 %357, %v210
    %v359 = vpop.permute.xlu0 %358
    %360 = vset.pattern.permute.xlu0 0
    %361 = vperm.xlu0 %360, %v211
    %v362 = vpop.permute.xlu0 %361
    %363 = vset.pattern.permute.xlu0 0
    %364 = vperm.xlu0 %363, %v212
    %v365 = vpop.permute.xlu0 %364
    %366 = vset.pattern.permute.xlu0 0
    %367 = vperm.xlu0 %366, %v213
    %v368 = vpop.permute.xlu0 %367
    %369 = vset.pattern.permute.xlu0 0
    %370 = vperm.xlu0 %369, %v214
    %v371 = vpop.permute.xlu0 %370
    %372 = vset.pattern.permute.xlu0 0
    %373 = vperm.xlu0 %372, %v215
    %v374 = vpop.permute.xlu0 %373
    %375 = vset.pattern.permute.xlu0 0
    %376 = vperm.xlu0 %375, %v216
    %v377 = vpop.permute.xlu0 %376
    %378 = vset.pattern.permute.xlu0 0
    %379 = vperm.xlu0 %378, %v217
    %v380 = vpop.permute.xlu0 %379
    %381 = vset.pattern.permute.xlu0 0
    %382 = vperm.xlu0 %381, %v218
    %v383 = vpop.permute.xlu0 %382
    %384 = vset.pattern.permute.xlu0 0
    %385 = vperm.xlu0 %384, %v219
    %v386 = vpop.permute.xlu0 %385
    %387 = vset.pattern.permute.xlu0 0
    %388 = vperm.xlu0 %387, %v220
    %v389 = vpop.permute.xlu0 %388
    %390 = vset.pattern.permute.xlu0 0
    %391 = vperm.xlu0 %390, %v221
    %v392 = vpop.permute.xlu0 %391
    %393 = vset.pattern.permute.xlu0 0
    %394 = vperm.xlu0 %393, %v222
    %v395 = vpop.permute.xlu0 %394
    %396 = vset.pattern.permute.xlu0 0
    %397 = vperm.xlu0 %396, %v223
    %v398 = vpop.permute.xlu0 %397
    %399 = vset.pattern.permute.xlu0 0
    %400 = vperm.xlu0 %399, %v224
    %v401 = vpop.permute.xlu0 %400
    %402 = vset.pattern.permute.xlu0 0
    %403 = vperm.xlu0 %402, %v225
    %v404 = vpop.permute.xlu0 %403
    %405 = vset.pattern.permute.xlu0 0
    %406 = vperm.xlu0 %405, %v226
    %v407 = vpop.permute.xlu0 %406
    %408 = vset.pattern.permute.xlu0 0
    %409 = vperm.xlu0 %408, %v227
    %v410 = vpop.permute.xlu0 %409
    %411 = vset.pattern.permute.xlu0 0
    %412 = vperm.xlu0 %411, %v228
    %v413 = vpop.permute.xlu0 %412
    %414 = vset.pattern.permute.xlu0 0
    %415 = vperm.xlu0 %414, %v229
    %v416 = vpop.permute.xlu0 %415
    %417 = vset.pattern.permute.xlu0 0
    %418 = vperm.xlu0 %417, %v230
    %v419 = vpop.permute.xlu0 %418
    %420 = vset.pattern.permute.xlu0 0
    %421 = vperm.xlu0 %420, %v231
    %v422 = vpop.permute.xlu0 %421
    %423 = vset.pattern.permute.xlu0 0
    %424 = vperm.xlu0 %423, %v232
    %v425 = vpop.permute.xlu0 %424
    %426 = vset.pattern.permute.xlu0 0
    %427 = vperm.xlu0 %426, %v233
    %v428 = vpop.permute.xlu0 %427
    %429 = vset.pattern.permute.xlu0 0
    %430 = vperm.xlu0 %429, %v234
    %v431 = vpop.permute.xlu0 %430
    %432 = vset.pattern.permute.xlu0 0
    %433 = vperm.xlu0 %432, %v235
    %v434 = vpop.permute.xlu0 %433
    %435 = vset.pattern.permute.xlu0 0
    %436 = vperm.xlu0 %435, %v236
    %v437 = vpop.permute.xlu0 %436
    %438 = vset.pattern.permute.xlu0 0
    %439 = vperm.xlu0 %438, %v237
    %v440 = vpop.permute.xlu0 %439
    %441 = vset.pattern.permute.xlu0 0
    %442 = vperm.xlu0 %441, %v238
    %v443 = vpop.permute.xlu0 %442
    %444 = vset.pattern.permute.xlu0 0
    %445 = vperm.xlu0 %444, %v239
    %v446 = vpop.permute.xlu0 %445
    %447 = vset.pattern.permute.xlu0 0
    %448 = vperm.xlu0 %447, %v240
    %v449 = vpop.permute.xlu0 %448
    %450 = vset.pattern.permute.xlu0 0
    %451 = vperm.xlu0 %450, %v241
    %v452 = vpop.permute.xlu0 %451
    %453 = vset.pattern.permute.xlu0 0
    %454 = vperm.xlu0 %453, %v242
    %v455 = vpop.permute.xlu0 %454
    %456 = vset.pattern.permute.xlu0 0
    %457 = vperm.xlu0 %456, %v243
    %v458 = vpop.permute.xlu0 %457
    %459 = vset.pattern.permute.xlu0 0
    %460 = vperm.xlu0 %459, %v244
    %v461 = vpop.permute.xlu0 %460
    %462 = vset.pattern.permute.xlu0 0
    %463 = vperm.xlu0 %462, %v245
    %v464 = vpop.permute.xlu0 %463
    %465 = vset.pattern.permute.xlu0 0
    %466 = vperm.xlu0 %465, %v246
    %v467 = vpop.permute.xlu0 %466
    %468 = vset.pattern.permute.xlu0 0
    %469 = vperm.xlu0 %468, %v247
    %v470 = vpop.permute.xlu0 %469
    %471 = vset.pattern.permute.xlu0 0
    %472 = vperm.xlu0 %471, %v248
    %v473 = vpop.permute.xlu0 %472
    %474 = vset.pattern.permute.xlu0 0
    %475 = vperm.xlu0 %474, %v249
    %v476 = vpop.permute.xlu0 %475
    %477 = vset.pattern.permute.xlu0 0
    %478 = vperm.xlu0 %477, %v250
    %v479 = vpop.permute.xlu0 %478
    %480 = vset.pattern.permute.xlu0 0
    %481 = vperm.xlu0 %480, %v251
    %v482 = vpop.permute.xlu0 %481
    %483 = vset.pattern.permute.xlu0 0
    %484 = vperm.xlu0 %483, %v252
    %v485 = vpop.permute.xlu0 %484
    %486 = vset.pattern.permute.xlu0 0
    %487 = vperm.xlu0 %486, %v253
    %v488 = vpop.permute.xlu0 %487
    %489 = vset.pattern.permute.xlu0 0
    %490 = vperm.xlu0 %489, %v254
    %v491 = vpop.permute.xlu0 %490
    %492 = vset.pattern.permute.xlu0 0
    %493 = vperm.xlu0 %492, %v255
    %v494 = vpop.permute.xlu0 %493
    %495 = vset.pattern.permute.xlu0 0
    %496 = vperm.xlu0 %495, %v256
    %v497 = vpop.permute.xlu0 %496
    %498 = vset.pattern.permute.xlu0 0
    %499 = vperm.xlu0 %498, %v257
    %v500 = vpop.permute.xlu0 %499
    %501 = vset.pattern.permute.xlu0 0
    %502 = vperm.xlu0 %501, %v258
    %v503 = vpop.permute.xlu0 %502
    %504 = vset.pattern.permute.xlu0 0
    %505 = vperm.xlu0 %504, %v259
    %v506 = vpop.permute.xlu0 %505
    %507 = vset.pattern.permute.xlu0 0
    %508 = vperm.xlu0 %507, %v260
    %v509 = vpop.permute.xlu0 %508
    %510 = vset.pattern.permute.xlu0 0
    %511 = vperm.xlu0 %510, %v261
    %v512 = vpop.permute.xlu0 %511
    %513 = vset.pattern.permute.xlu0 0
    %514 = vperm.xlu0 %513, %v262
    %v515 = vpop.permute.xlu0 %514
    %516 = vset.pattern.permute.xlu0 0
    %517 = vperm.xlu0 %516, %v263
    %v518 = vpop.permute.xlu0 %517
    %519 = vset.pattern.permute.xlu0 0
    %520 = vperm.xlu0 %519, %v264
    %v521 = vpop.permute.xlu0 %520
    %522 = vset.pattern.permute.xlu0 0
    %523 = vperm.xlu0 %522, %v265
    %v524 = vpop.permute.xlu0 %523
    %525 = vset.pattern.permute.xlu0 0
    %526 = vperm.xlu0 %525, %v266
    %v527 = vpop.permute.xlu0 %526
    %528 = vset.pattern.permute.xlu0 0
    %529 = vperm.xlu0 %528, %v267
    %v530 = vpop.permute.xlu0 %529
    %531 = vset.pattern.permute.xlu0 0
    %532 = vperm.xlu0 %531, %v268
    %v533 = vpop.permute.xlu0 %532
    %534 = vset.pattern.permute.xlu0 0
    %535 = vperm.xlu0 %534, %v269
    %v536 = vpop.permute.xlu0 %535
    %v537 = vlaneseq
    %v538 = vand.u32 %v537, 127
    %v539 = vlaneseq
    %v540 = vshrl.u32 %v539, 7
    %v541 = vsub.s32 %v538, %v540
    %v542 = vrot.slane %v347, %v541
    %v543 = vadd.s32 %v538, 4294967288
    %v544 = vlaneseq
    %v545 = vshrl.u32 %v544, 7
    %v546 = vsub.s32 %v543, %v545
    %v547 = vrot.slane %v350, %v546
    %vm548 = vcmask 130112
    %v549 = vsel %vm548, %v547, %v542
    %v550 = vadd.s32 %v538, 4294967280
    %v551 = vlaneseq
    %v552 = vshrl.u32 %v551, 7
    %v553 = vsub.s32 %v550, %v552
    %v554 = vrot.slane %v353, %v553
    %vm555 = vcmask 195712
    %v556 = vsel %vm555, %v554, %v549
    %v557 = vadd.s32 %v538, 4294967272
    %v558 = vlaneseq
    %v559 = vshrl.u32 %v558, 7
    %v560 = vsub.s32 %v557, %v559
    %v561 = vrot.slane %v356, %v560
    %vm562 = vcmask 261312
    %v563 = vsel %vm562, %v561, %v556
    %v564 = vadd.s32 %v538, 4294967264
    %v565 = vlaneseq
    %v566 = vshrl.u32 %v565, 7
    %v567 = vsub.s32 %v564, %v566
    %v568 = vrot.slane %v359, %v567
    %vm569 = vcmask 326912
    %v570 = vsel %vm569, %v568, %v563
    %v571 = vadd.s32 %v538, 4294967256
    %v572 = vlaneseq
    %v573 = vshrl.u32 %v572, 7
    %v574 = vsub.s32 %v571, %v573
    %v575 = vrot.slane %v362, %v574
    %vm576 = vcmask 392512
    %v577 = vsel %vm576, %v575, %v570
    %v578 = vadd.s32 %v538, 4294967248
    %v579 = vlaneseq
    %v580 = vshrl.u32 %v579, 7
    %v581 = vsub.s32 %v578, %v580
    %v582 = vrot.slane %v365, %v581
    %vm583 = vcmask 458112
    %v584 = vsel %vm583, %v582, %v577
    %v585 = vadd.s32 %v538, 4294967240
    %v586 = vlaneseq
    %v587 = vshrl.u32 %v586, 7
    %v588 = vsub.s32 %v585, %v587
    %v589 = vrot.slane %v368, %v588
    %vm590 = vcmask 523712
    %v591 = vsel %vm590, %v589, %v584
    %v592 = vadd.s32 %v538, 4294967232
    %v593 = vlaneseq
    %v594 = vshrl.u32 %v593, 7
    %v595 = vsub.s32 %v592, %v594
    %v596 = vrot.slane %v371, %v595
    %vm597 = vcmask 589312
    %v598 = vsel %vm597, %v596, %v591
    %v599 = vadd.s32 %v538, 4294967224
    %v600 = vlaneseq
    %v601 = vshrl.u32 %v600, 7
    %v602 = vsub.s32 %v599, %v601
    %v603 = vrot.slane %v374, %v602
    %vm604 = vcmask 654912
    %v605 = vsel %vm604, %v603, %v598
    %v606 = vadd.s32 %v538, 4294967216
    %v607 = vlaneseq
    %v608 = vshrl.u32 %v607, 7
    %v609 = vsub.s32 %v606, %v608
    %v610 = vrot.slane %v377, %v609
    %vm611 = vcmask 720512
    %v612 = vsel %vm611, %v610, %v605
    %v613 = vadd.s32 %v538, 4294967208
    %v614 = vlaneseq
    %v615 = vshrl.u32 %v614, 7
    %v616 = vsub.s32 %v613, %v615
    %v617 = vrot.slane %v380, %v616
    %vm618 = vcmask 786112
    %v619 = vsel %vm618, %v617, %v612
    %v620 = vadd.s32 %v538, 4294967200
    %v621 = vlaneseq
    %v622 = vshrl.u32 %v621, 7
    %v623 = vsub.s32 %v620, %v622
    %v624 = vrot.slane %v383, %v623
    %vm625 = vcmask 851712
    %v626 = vsel %vm625, %v624, %v619
    %v627 = vadd.s32 %v538, 4294967192
    %v628 = vlaneseq
    %v629 = vshrl.u32 %v628, 7
    %v630 = vsub.s32 %v627, %v629
    %v631 = vrot.slane %v386, %v630
    %vm632 = vcmask 917312
    %v633 = vsel %vm632, %v631, %v626
    %v634 = vadd.s32 %v538, 4294967184
    %v635 = vlaneseq
    %v636 = vshrl.u32 %v635, 7
    %v637 = vsub.s32 %v634, %v636
    %v638 = vrot.slane %v389, %v637
    %vm639 = vcmask 982912
    %v640 = vsel %vm639, %v638, %v633
    %v641 = vadd.s32 %v538, 4294967176
    %v642 = vlaneseq
    %v643 = vshrl.u32 %v642, 7
    %v644 = vsub.s32 %v641, %v643
    %v645 = vrot.slane %v392, %v644
    %vm646 = vcmask 1048512
    %v647 = vsel %vm646, %v645, %v640
    %v648 = vlaneseq
    %v649 = vshrl.u32 %v648, 7
    %v650 = vsub.s32 %v538, %v649
    %v651 = vrot.slane %v395, %v650
    %v652 = vlaneseq
    %v653 = vshrl.u32 %v652, 7
    %v654 = vsub.s32 %v543, %v653
    %v655 = vrot.slane %v398, %v654
    %v656 = vsel %vm548, %v655, %v651
    %v657 = vlaneseq
    %v658 = vshrl.u32 %v657, 7
    %v659 = vsub.s32 %v550, %v658
    %v660 = vrot.slane %v401, %v659
    %v661 = vsel %vm555, %v660, %v656
    %v662 = vlaneseq
    %v663 = vshrl.u32 %v662, 7
    %v664 = vsub.s32 %v557, %v663
    %v665 = vrot.slane %v404, %v664
    %v666 = vsel %vm562, %v665, %v661
    %v667 = vlaneseq
    %v668 = vshrl.u32 %v667, 7
    %v669 = vsub.s32 %v564, %v668
    %v670 = vrot.slane %v407, %v669
    %v671 = vsel %vm569, %v670, %v666
    %v672 = vlaneseq
    %v673 = vshrl.u32 %v672, 7
    %v674 = vsub.s32 %v571, %v673
    %v675 = vrot.slane %v410, %v674
    %v676 = vsel %vm576, %v675, %v671
    %v677 = vlaneseq
    %v678 = vshrl.u32 %v677, 7
    %v679 = vsub.s32 %v578, %v678
    %v680 = vrot.slane %v413, %v679
    %v681 = vsel %vm583, %v680, %v676
    %v682 = vlaneseq
    %v683 = vshrl.u32 %v682, 7
    %v684 = vsub.s32 %v585, %v683
    %v685 = vrot.slane %v416, %v684
    %v686 = vsel %vm590, %v685, %v681
    %v687 = vlaneseq
    %v688 = vshrl.u32 %v687, 7
    %v689 = vsub.s32 %v592, %v688
    %v690 = vrot.slane %v419, %v689
    %v691 = vsel %vm597, %v690, %v686
    %v692 = vlaneseq
    %v693 = vshrl.u32 %v692, 7
    %v694 = vsub.s32 %v599, %v693
    %v695 = vrot.slane %v422, %v694
    %v696 = vsel %vm604, %v695, %v691
    %v697 = vlaneseq
    %v698 = vshrl.u32 %v697, 7
    %v699 = vsub.s32 %v606, %v698
    %v700 = vrot.slane %v425, %v699
    %v701 = vsel %vm611, %v700, %v696
    %v702 = vlaneseq
    %v703 = vshrl.u32 %v702, 7
    %v704 = vsub.s32 %v613, %v703
    %v705 = vrot.slane %v428, %v704
    %v706 = vsel %vm618, %v705, %v701
    %v707 = vlaneseq
    %v708 = vshrl.u32 %v707, 7
    %v709 = vsub.s32 %v620, %v708
    %v710 = vrot.slane %v431, %v709
    %v711 = vsel %vm625, %v710, %v706
    %v712 = vlaneseq
    %v713 = vshrl.u32 %v712, 7
    %v714 = vsub.s32 %v627, %v713
    %v715 = vrot.slane %v434, %v714
    %v716 = vsel %vm632, %v715, %v711
    %v717 = vlaneseq
    %v718 = vshrl.u32 %v717, 7
    %v719 = vsub.s32 %v634, %v718
    %v720 = vrot.slane %v437, %v719
    %v721 = vsel %vm639, %v720, %v716
    %v722 = vlaneseq
    %v723 = vshrl.u32 %v722, 7
    %v724 = vsub.s32 %v641, %v723
    %v725 = vrot.slane %v440, %v724
    %v726 = vsel %vm646, %v725, %v721
    %v727 = vlaneseq
    %v728 = vshrl.u32 %v727, 7
    %v729 = vsub.s32 %v538, %v728
    %v730 = vrot.slane %v443, %v729
    %v731 = vlaneseq
    %v732 = vshrl.u32 %v731, 7
    %v733 = vsub.s32 %v543, %v732
    %v734 = vrot.slane %v446, %v733
    %v735 = vsel %vm548, %v734, %v730
    %v736 = vlaneseq
    %v737 = vshrl.u32 %v736, 7
    %v738 = vsub.s32 %v550, %v737
    %v739 = vrot.slane %v449, %v738
    %v740 = vsel %vm555, %v739, %v735
    %v741 = vlaneseq
    %v742 = vshrl.u32 %v741, 7
    %v743 = vsub.s32 %v557, %v742
    %v744 = vrot.slane %v452, %v743
    %v745 = vsel %vm562, %v744, %v740
    %v746 = vlaneseq
    %v747 = vshrl.u32 %v746, 7
    %v748 = vsub.s32 %v564, %v747
    %v749 = vrot.slane %v455, %v748
    %v750 = vsel %vm569, %v749, %v745
    %v751 = vlaneseq
    %v752 = vshrl.u32 %v751, 7
    %v753 = vsub.s32 %v571, %v752
    %v754 = vrot.slane %v458, %v753
    %v755 = vsel %vm576, %v754, %v750
    %v756 = vlaneseq
    %v757 = vshrl.u32 %v756, 7
    %v758 = vsub.s32 %v578, %v757
    %v759 = vrot.slane %v461, %v758
    %v760 = vsel %vm583, %v759, %v755
    %v761 = vlaneseq
    %v762 = vshrl.u32 %v761, 7
    %v763 = vsub.s32 %v585, %v762
    %v764 = vrot.slane %v464, %v763
    %v765 = vsel %vm590, %v764, %v760
    %v766 = vlaneseq
    %v767 = vshrl.u32 %v766, 7
    %v768 = vsub.s32 %v592, %v767
    %v769 = vrot.slane %v467, %v768
    %v770 = vsel %vm597, %v769, %v765
    %v771 = vlaneseq
    %v772 = vshrl.u32 %v771, 7
    %v773 = vsub.s32 %v599, %v772
    %v774 = vrot.slane %v470, %v773
    %v775 = vsel %vm604, %v774, %v770
    %v776 = vlaneseq
    %v777 = vshrl.u32 %v776, 7
    %v778 = vsub.s32 %v606, %v777
    %v779 = vrot.slane %v473, %v778
    %v780 = vsel %vm611, %v779, %v775
    %v781 = vlaneseq
    %v782 = vshrl.u32 %v781, 7
    %v783 = vsub.s32 %v613, %v782
    %v784 = vrot.slane %v476, %v783
    %v785 = vsel %vm618, %v784, %v780
    %v786 = vlaneseq
    %v787 = vshrl.u32 %v786, 7
    %v788 = vsub.s32 %v620, %v787
    %v789 = vrot.slane %v479, %v788
    %v790 = vsel %vm625, %v789, %v785
    %v791 = vlaneseq
    %v792 = vshrl.u32 %v791, 7
    %v793 = vsub.s32 %v627, %v792
    %v794 = vrot.slane %v482, %v793
    %v795 = vsel %vm632, %v794, %v790
    %v796 = vlaneseq
    %v797 = vshrl.u32 %v796, 7
    %v798 = vsub.s32 %v634, %v797
    %v799 = vrot.slane %v485, %v798
    %v800 = vsel %vm639, %v799, %v795
    %v801 = vlaneseq
    %v802 = vshrl.u32 %v801, 7
    %v803 = vsub.s32 %v641, %v802
    %v804 = vrot.slane %v488, %v803
    %v805 = vsel %vm646, %v804, %v800
    %v806 = vlaneseq
    %v807 = vshrl.u32 %v806, 7
    %v808 = vsub.s32 %v538, %v807
    %v809 = vrot.slane %v491, %v808
    %v810 = vlaneseq
    %v811 = vshrl.u32 %v810, 7
    %v812 = vsub.s32 %v543, %v811
    %v813 = vrot.slane %v494, %v812
    %v814 = vsel %vm548, %v813, %v809
    %v815 = vlaneseq
    %v816 = vshrl.u32 %v815, 7
    %v817 = vsub.s32 %v550, %v816
    %v818 = vrot.slane %v497, %v817
    %v819 = vsel %vm555, %v818, %v814
    %v820 = vlaneseq
    %v821 = vshrl.u32 %v820, 7
    %v822 = vsub.s32 %v557, %v821
    %v823 = vrot.slane %v500, %v822
    %v824 = vsel %vm562, %v823, %v819
    %v825 = vlaneseq
    %v826 = vshrl.u32 %v825, 7
    %v827 = vsub.s32 %v564, %v826
    %v828 = vrot.slane %v503, %v827
    %v829 = vsel %vm569, %v828, %v824
    %v830 = vlaneseq
    %v831 = vshrl.u32 %v830, 7
    %v832 = vsub.s32 %v571, %v831
    %v833 = vrot.slane %v506, %v832
    %v834 = vsel %vm576, %v833, %v829
    %v835 = vlaneseq
    %v836 = vshrl.u32 %v835, 7
    %v837 = vsub.s32 %v578, %v836
    %v838 = vrot.slane %v509, %v837
    %v839 = vsel %vm583, %v838, %v834
    %v840 = vlaneseq
    %v841 = vshrl.u32 %v840, 7
    %v842 = vsub.s32 %v585, %v841
    %v843 = vrot.slane %v512, %v842
    %v844 = vsel %vm590, %v843, %v839
    %v845 = vlaneseq
    %v846 = vshrl.u32 %v845, 7
    %v847 = vsub.s32 %v592, %v846
    %v848 = vrot.slane %v515, %v847
    %v849 = vsel %vm597, %v848, %v844
    %v850 = vlaneseq
    %v851 = vshrl.u32 %v850, 7
    %v852 = vsub.s32 %v599, %v851
    %v853 = vrot.slane %v518, %v852
    %v854 = vsel %vm604, %v853, %v849
    %v855 = vlaneseq
    %v856 = vshrl.u32 %v855, 7
    %v857 = vsub.s32 %v606, %v856
    %v858 = vrot.slane %v521, %v857
    %v859 = vsel %vm611, %v858, %v854
    %v860 = vlaneseq
    %v861 = vshrl.u32 %v860, 7
    %v862 = vsub.s32 %v613, %v861
    %v863 = vrot.slane %v524, %v862
    %v864 = vsel %vm618, %v863, %v859
    %v865 = vlaneseq
    %v866 = vshrl.u32 %v865, 7
    %v867 = vsub.s32 %v620, %v866
    %v868 = vrot.slane %v527, %v867
    %v869 = vsel %vm625, %v868, %v864
    %v870 = vlaneseq
    %v871 = vshrl.u32 %v870, 7
    %v872 = vsub.s32 %v627, %v871
    %v873 = vrot.slane %v530, %v872
    %v874 = vsel %vm632, %v873, %v869
    %v875 = vlaneseq
    %v876 = vshrl.u32 %v875, 7
    %v877 = vsub.s32 %v634, %v876
    %v878 = vrot.slane %v533, %v877
    %v879 = vsel %vm639, %v878, %v874
    %v880 = vlaneseq
    %v881 = vshrl.u32 %v880, 7
    %v882 = vsub.s32 %v641, %v881
    %v883 = vrot.slane %v536, %v882
    %v884 = vsel %vm646, %v883, %v879
    %vm885 = vcmask 1041409
    %v886 = vsel %vm885, %v805, %v647
    %v887 = vsel %vm885, %v884, %v726
    %v890 = vadd.f32 %v274, %v886
    %v891 = vadd.f32 %v278, %v887
    %s892 = scalar_lea.vmem %s1, 1
    %v893 = vld [vmem:[%s892] ss:$4 sm:$0x3]
    %v894 = vlaneseq
    %v895 = vshrl.u32 %v894, 7
    %v896 = vsub.s32 1, %v895
    %v897 = vrot.slane %v27, %v896
    %v898 = vlaneseq
    %v899 = vshrl.u32 %v898, 7
    %v900 = vsub.s32 1, %v899
    %v901 = vrot.slane %v28, %v900
    %v903 = vlaneseq
    %v904 = vshrl.u32 %v903, 7
    %v905 = vsub.s32 0, %v904
    %v906 = vrot.slane %v893, %v905
    %v907 = vlaneseq
    %v908 = vshrl.u32 %v907, 7
    %v909 = vsub.s32 1, %v908
    %v910 = vrot.slane %v893, %v909
    %912 = vbcast.lane.b32.xlu0 %v906, 256
    %v913 = vpop.permute.xlu0 %912
    %s915 = sor.u32 256, 8
    %916 = vbcast.lane.b32.xlu0 %v906, %s915
    %v917 = vpop.permute.xlu0 %916
    %s919 = sor.u32 256, 16
    %920 = vbcast.lane.b32.xlu0 %v906, %s919
    %v921 = vpop.permute.xlu0 %920
    %s923 = sor.u32 256, 24
    %924 = vbcast.lane.b32.xlu0 %v906, %s923
    %v925 = vpop.permute.xlu0 %924
    %s927 = sor.u32 256, 32
    %928 = vbcast.lane.b32.xlu0 %v906, %s927
    %v929 = vpop.permute.xlu0 %928
    %s931 = sor.u32 256, 40
    %932 = vbcast.lane.b32.xlu0 %v906, %s931
    %v933 = vpop.permute.xlu0 %932
    %s935 = sor.u32 256, 48
    %936 = vbcast.lane.b32.xlu0 %v906, %s935
    %v937 = vpop.permute.xlu0 %936
    %s939 = sor.u32 256, 56
    %940 = vbcast.lane.b32.xlu0 %v906, %s939
    %v941 = vpop.permute.xlu0 %940
    %s943 = sor.u32 256, 64
    %944 = vbcast.lane.b32.xlu0 %v906, %s943
    %v945 = vpop.permute.xlu0 %944
    %s947 = sor.u32 256, 72
    %948 = vbcast.lane.b32.xlu0 %v906, %s947
    %v949 = vpop.permute.xlu0 %948
    %s951 = sor.u32 256, 80
    %952 = vbcast.lane.b32.xlu0 %v906, %s951
    %v953 = vpop.permute.xlu0 %952
    %s955 = sor.u32 256, 88
    %956 = vbcast.lane.b32.xlu0 %v906, %s955
    %v957 = vpop.permute.xlu0 %956
    %s959 = sor.u32 256, 96
    %960 = vbcast.lane.b32.xlu0 %v906, %s959
    %v961 = vpop.permute.xlu0 %960
    %s963 = sor.u32 256, 104
    %964 = vbcast.lane.b32.xlu0 %v906, %s963
    %v965 = vpop.permute.xlu0 %964
    %s967 = sor.u32 256, 112
    %968 = vbcast.lane.b32.xlu0 %v906, %s967
    %v969 = vpop.permute.xlu0 %968
    %s971 = sor.u32 256, 120
    %972 = vbcast.lane.b32.xlu0 %v906, %s971
    %v973 = vpop.permute.xlu0 %972
    %975 = vbcast.lane.b32.xlu0 %v910, 256
    %v976 = vpop.permute.xlu0 %975
    %s978 = sor.u32 256, 8
    %979 = vbcast.lane.b32.xlu0 %v910, %s978
    %v980 = vpop.permute.xlu0 %979
    %s982 = sor.u32 256, 16
    %983 = vbcast.lane.b32.xlu0 %v910, %s982
    %v984 = vpop.permute.xlu0 %983
    %s986 = sor.u32 256, 24
    %987 = vbcast.lane.b32.xlu0 %v910, %s986
    %v988 = vpop.permute.xlu0 %987
    %s990 = sor.u32 256, 32
    %991 = vbcast.lane.b32.xlu0 %v910, %s990
    %v992 = vpop.permute.xlu0 %991
    %s994 = sor.u32 256, 40
    %995 = vbcast.lane.b32.xlu0 %v910, %s994
    %v996 = vpop.permute.xlu0 %995
    %s998 = sor.u32 256, 48
    %999 = vbcast.lane.b32.xlu0 %v910, %s998
    %v1000 = vpop.permute.xlu0 %999
    %s1002 = sor.u32 256, 56
    %1003 = vbcast.lane.b32.xlu0 %v910, %s1002
    %v1004 = vpop.permute.xlu0 %1003
    %s1006 = sor.u32 256, 64
    %1007 = vbcast.lane.b32.xlu0 %v910, %s1006
    %v1008 = vpop.permute.xlu0 %1007
    %s1010 = sor.u32 256, 72
    %1011 = vbcast.lane.b32.xlu0 %v910, %s1010
    %v1012 = vpop.permute.xlu0 %1011
    %s1014 = sor.u32 256, 80
    %1015 = vbcast.lane.b32.xlu0 %v910, %s1014
    %v1016 = vpop.permute.xlu0 %1015
    %s1018 = sor.u32 256, 88
    %1019 = vbcast.lane.b32.xlu0 %v910, %s1018
    %v1020 = vpop.permute.xlu0 %1019
    %s1022 = sor.u32 256, 96
    %1023 = vbcast.lane.b32.xlu0 %v910, %s1022
    %v1024 = vpop.permute.xlu0 %1023
    %s1026 = sor.u32 256, 104
    %1027 = vbcast.lane.b32.xlu0 %v910, %s1026
    %v1028 = vpop.permute.xlu0 %1027
    %s1030 = sor.u32 256, 112
    %1031 = vbcast.lane.b32.xlu0 %v910, %s1030
    %v1032 = vpop.permute.xlu0 %1031
    %s1034 = sor.u32 256, 120
    %1035 = vbcast.lane.b32.xlu0 %v910, %s1034
    %v1036 = vpop.permute.xlu0 %1035
    %v1069 = vmul.f32 %v897, %v913
    %v1070 = vmul.f32 %v897, %v917
    %v1071 = vmul.f32 %v897, %v921
    %v1072 = vmul.f32 %v897, %v925
    %v1073 = vmul.f32 %v897, %v929
    %v1074 = vmul.f32 %v897, %v933
    %v1075 = vmul.f32 %v897, %v937
    %v1076 = vmul.f32 %v897, %v941
    %v1077 = vmul.f32 %v897, %v945
    %v1078 = vmul.f32 %v897, %v949
    %v1079 = vmul.f32 %v897, %v953
    %v1080 = vmul.f32 %v897, %v957
    %v1081 = vmul.f32 %v897, %v961
    %v1082 = vmul.f32 %v897, %v965
    %v1083 = vmul.f32 %v897, %v969
    %v1084 = vmul.f32 %v897, %v973
    %v1085 = vmul.f32 %v897, %v976
    %v1086 = vmul.f32 %v897, %v980
    %v1087 = vmul.f32 %v897, %v984
    %v1088 = vmul.f32 %v897, %v988
    %v1089 = vmul.f32 %v897, %v992
    %v1090 = vmul.f32 %v897, %v996
    %v1091 = vmul.f32 %v897, %v1000
    %v1092 = vmul.f32 %v897, %v1004
    %v1093 = vmul.f32 %v897, %v1008
    %v1094 = vmul.f32 %v897, %v1012
    %v1095 = vmul.f32 %v897, %v1016
    %v1096 = vmul.f32 %v897, %v1020
    %v1097 = vmul.f32 %v897, %v1024
    %v1098 = vmul.f32 %v897, %v1028
    %v1099 = vmul.f32 %v897, %v1032
    %v1100 = vmul.f32 %v897, %v1036
    %v1101 = vmul.f32 %v901, %v913
    %v1102 = vmul.f32 %v901, %v917
    %v1103 = vmul.f32 %v901, %v921
    %v1104 = vmul.f32 %v901, %v925
    %v1105 = vmul.f32 %v901, %v929
    %v1106 = vmul.f32 %v901, %v933
    %v1107 = vmul.f32 %v901, %v937
    %v1108 = vmul.f32 %v901, %v941
    %v1109 = vmul.f32 %v901, %v945
    %v1110 = vmul.f32 %v901, %v949
    %v1111 = vmul.f32 %v901, %v953
    %v1112 = vmul.f32 %v901, %v957
    %v1113 = vmul.f32 %v901, %v961
    %v1114 = vmul.f32 %v901, %v965
    %v1115 = vmul.f32 %v901, %v969
    %v1116 = vmul.f32 %v901, %v973
    %v1117 = vmul.f32 %v901, %v976
    %v1118 = vmul.f32 %v901, %v980
    %v1119 = vmul.f32 %v901, %v984
    %v1120 = vmul.f32 %v901, %v988
    %v1121 = vmul.f32 %v901, %v992
    %v1122 = vmul.f32 %v901, %v996
    %v1123 = vmul.f32 %v901, %v1000
    %v1124 = vmul.f32 %v901, %v1004
    %v1125 = vmul.f32 %v901, %v1008
    %v1126 = vmul.f32 %v901, %v1012
    %v1127 = vmul.f32 %v901, %v1016
    %v1128 = vmul.f32 %v901, %v1020
    %v1129 = vmul.f32 %v901, %v1024
    %v1130 = vmul.f32 %v901, %v1028
    %v1131 = vmul.f32 %v901, %v1032
    %v1132 = vmul.f32 %v901, %v1036
    %1197 = vset.pattern.permute.xlu0 0
    %1198 = vperm.xlu0 %1197, %v1069
    %v1199 = vpop.permute.xlu0 %1198
    %1200 = vset.pattern.permute.xlu0 0
    %1201 = vperm.xlu0 %1200, %v1070
    %v1202 = vpop.permute.xlu0 %1201
    %1203 = vset.pattern.permute.xlu0 0
    %1204 = vperm.xlu0 %1203, %v1071
    %v1205 = vpop.permute.xlu0 %1204
    %1206 = vset.pattern.permute.xlu0 0
    %1207 = vperm.xlu0 %1206, %v1072
    %v1208 = vpop.permute.xlu0 %1207
    %1209 = vset.pattern.permute.xlu0 0
    %1210 = vperm.xlu0 %1209, %v1073
    %v1211 = vpop.permute.xlu0 %1210
    %1212 = vset.pattern.permute.xlu0 0
    %1213 = vperm.xlu0 %1212, %v1074
    %v1214 = vpop.permute.xlu0 %1213
    %1215 = vset.pattern.permute.xlu0 0
    %1216 = vperm.xlu0 %1215, %v1075
    %v1217 = vpop.permute.xlu0 %1216
    %1218 = vset.pattern.permute.xlu0 0
    %1219 = vperm.xlu0 %1218, %v1076
    %v1220 = vpop.permute.xlu0 %1219
    %1221 = vset.pattern.permute.xlu0 0
    %1222 = vperm.xlu0 %1221, %v1077
    %v1223 = vpop.permute.xlu0 %1222
    %1224 = vset.pattern.permute.xlu0 0
    %1225 = vperm.xlu0 %1224, %v1078
    %v1226 = vpop.permute.xlu0 %1225
    %1227 = vset.pattern.permute.xlu0 0
    %1228 = vperm.xlu0 %1227, %v1079
    %v1229 = vpop.permute.xlu0 %1228
    %1230 = vset.pattern.permute.xlu0 0
    %1231 = vperm.xlu0 %1230, %v1080
    %v1232 = vpop.permute.xlu0 %1231
    %1233 = vset.pattern.permute.xlu0 0
    %1234 = vperm.xlu0 %1233, %v1081
    %v1235 = vpop.permute.xlu0 %1234
    %1236 = vset.pattern.permute.xlu0 0
    %1237 = vperm.xlu0 %1236, %v1082
    %v1238 = vpop.permute.xlu0 %1237
    %1239 = vset.pattern.permute.xlu0 0
    %1240 = vperm.xlu0 %1239, %v1083
    %v1241 = vpop.permute.xlu0 %1240
    %1242 = vset.pattern.permute.xlu0 0
    %1243 = vperm.xlu0 %1242, %v1084
    %v1244 = vpop.permute.xlu0 %1243
    %1245 = vset.pattern.permute.xlu0 0
    %1246 = vperm.xlu0 %1245, %v1085
    %v1247 = vpop.permute.xlu0 %1246
    %1248 = vset.pattern.permute.xlu0 0
    %1249 = vperm.xlu0 %1248, %v1086
    %v1250 = vpop.permute.xlu0 %1249
    %1251 = vset.pattern.permute.xlu0 0
    %1252 = vperm.xlu0 %1251, %v1087
    %v1253 = vpop.permute.xlu0 %1252
    %1254 = vset.pattern.permute.xlu0 0
    %1255 = vperm.xlu0 %1254, %v1088
    %v1256 = vpop.permute.xlu0 %1255
    %1257 = vset.pattern.permute.xlu0 0
    %1258 = vperm.xlu0 %1257, %v1089
    %v1259 = vpop.permute.xlu0 %1258
    %1260 = vset.pattern.permute.xlu0 0
    %1261 = vperm.xlu0 %1260, %v1090
    %v1262 = vpop.permute.xlu0 %1261
    %1263 = vset.pattern.permute.xlu0 0
    %1264 = vperm.xlu0 %1263, %v1091
    %v1265 = vpop.permute.xlu0 %1264
    %1266 = vset.pattern.permute.xlu0 0
    %1267 = vperm.xlu0 %1266, %v1092
    %v1268 = vpop.permute.xlu0 %1267
    %1269 = vset.pattern.permute.xlu0 0
    %1270 = vperm.xlu0 %1269, %v1093
    %v1271 = vpop.permute.xlu0 %1270
    %1272 = vset.pattern.permute.xlu0 0
    %1273 = vperm.xlu0 %1272, %v1094
    %v1274 = vpop.permute.xlu0 %1273
    %1275 = vset.pattern.permute.xlu0 0
    %1276 = vperm.xlu0 %1275, %v1095
    %v1277 = vpop.permute.xlu0 %1276
    %1278 = vset.pattern.permute.xlu0 0
    %1279 = vperm.xlu0 %1278, %v1096
    %v1280 = vpop.permute.xlu0 %1279
    %1281 = vset.pattern.permute.xlu0 0
    %1282 = vperm.xlu0 %1281, %v1097
    %v1283 = vpop.permute.xlu0 %1282
    %1284 = vset.pattern.permute.xlu0 0
    %1285 = vperm.xlu0 %1284, %v1098
    %v1286 = vpop.permute.xlu0 %1285
    %1287 = vset.pattern.permute.xlu0 0
    %1288 = vperm.xlu0 %1287, %v1099
    %v1289 = vpop.permute.xlu0 %1288
    %1290 = vset.pattern.permute.xlu0 0
    %1291 = vperm.xlu0 %1290, %v1100
    %v1292 = vpop.permute.xlu0 %1291
    %1293 = vset.pattern.permute.xlu0 0
    %1294 = vperm.xlu0 %1293, %v1101
    %v1295 = vpop.permute.xlu0 %1294
    %1296 = vset.pattern.permute.xlu0 0
    %1297 = vperm.xlu0 %1296, %v1102
    %v1298 = vpop.permute.xlu0 %1297
    %1299 = vset.pattern.permute.xlu0 0
    %1300 = vperm.xlu0 %1299, %v1103
    %v1301 = vpop.permute.xlu0 %1300
    %1302 = vset.pattern.permute.xlu0 0
    %1303 = vperm.xlu0 %1302, %v1104
    %v1304 = vpop.permute.xlu0 %1303
    %1305 = vset.pattern.permute.xlu0 0
    %1306 = vperm.xlu0 %1305, %v1105
    %v1307 = vpop.permute.xlu0 %1306
    %1308 = vset.pattern.permute.xlu0 0
    %1309 = vperm.xlu0 %1308, %v1106
    %v1310 = vpop.permute.xlu0 %1309
    %1311 = vset.pattern.permute.xlu0 0
    %1312 = vperm.xlu0 %1311, %v1107
    %v1313 = vpop.permute.xlu0 %1312
    %1314 = vset.pattern.permute.xlu0 0
    %1315 = vperm.xlu0 %1314, %v1108
    %v1316 = vpop.permute.xlu0 %1315
    %1317 = vset.pattern.permute.xlu0 0
    %1318 = vperm.xlu0 %1317, %v1109
    %v1319 = vpop.permute.xlu0 %1318
    %1320 = vset.pattern.permute.xlu0 0
    %1321 = vperm.xlu0 %1320, %v1110
    %v1322 = vpop.permute.xlu0 %1321
    %1323 = vset.pattern.permute.xlu0 0
    %1324 = vperm.xlu0 %1323, %v1111
    %v1325 = vpop.permute.xlu0 %1324
    %1326 = vset.pattern.permute.xlu0 0
    %1327 = vperm.xlu0 %1326, %v1112
    %v1328 = vpop.permute.xlu0 %1327
    %1329 = vset.pattern.permute.xlu0 0
    %1330 = vperm.xlu0 %1329, %v1113
    %v1331 = vpop.permute.xlu0 %1330
    %1332 = vset.pattern.permute.xlu0 0
    %1333 = vperm.xlu0 %1332, %v1114
    %v1334 = vpop.permute.xlu0 %1333
    %1335 = vset.pattern.permute.xlu0 0
    %1336 = vperm.xlu0 %1335, %v1115
    %v1337 = vpop.permute.xlu0 %1336
    %1338 = vset.pattern.permute.xlu0 0
    %1339 = vperm.xlu0 %1338, %v1116
    %v1340 = vpop.permute.xlu0 %1339
    %1341 = vset.pattern.permute.xlu0 0
    %1342 = vperm.xlu0 %1341, %v1117
    %v1343 = vpop.permute.xlu0 %1342
    %1344 = vset.pattern.permute.xlu0 0
    %1345 = vperm.xlu0 %1344, %v1118
    %v1346 = vpop.permute.xlu0 %1345
    %1347 = vset.pattern.permute.xlu0 0
    %1348 = vperm.xlu0 %1347, %v1119
    %v1349 = vpop.permute.xlu0 %1348
    %1350 = vset.pattern.permute.xlu0 0
    %1351 = vperm.xlu0 %1350, %v1120
    %v1352 = vpop.permute.xlu0 %1351
    %1353 = vset.pattern.permute.xlu0 0
    %1354 = vperm.xlu0 %1353, %v1121
    %v1355 = vpop.permute.xlu0 %1354
    %1356 = vset.pattern.permute.xlu0 0
    %1357 = vperm.xlu0 %1356, %v1122
    %v1358 = vpop.permute.xlu0 %1357
    %1359 = vset.pattern.permute.xlu0 0
    %1360 = vperm.xlu0 %1359, %v1123
    %v1361 = vpop.permute.xlu0 %1360
    %1362 = vset.pattern.permute.xlu0 0
    %1363 = vperm.xlu0 %1362, %v1124
    %v1364 = vpop.permute.xlu0 %1363
    %1365 = vset.pattern.permute.xlu0 0
    %1366 = vperm.xlu0 %1365, %v1125
    %v1367 = vpop.permute.xlu0 %1366
    %1368 = vset.pattern.permute.xlu0 0
    %1369 = vperm.xlu0 %1368, %v1126
    %v1370 = vpop.permute.xlu0 %1369
    %1371 = vset.pattern.permute.xlu0 0
    %1372 = vperm.xlu0 %1371, %v1127
    %v1373 = vpop.permute.xlu0 %1372
    %1374 = vset.pattern.permute.xlu0 0
    %1375 = vperm.xlu0 %1374, %v1128
    %v1376 = vpop.permute.xlu0 %1375
    %1377 = vset.pattern.permute.xlu0 0
    %1378 = vperm.xlu0 %1377, %v1129
    %v1379 = vpop.permute.xlu0 %1378
    %1380 = vset.pattern.permute.xlu0 0
    %1381 = vperm.xlu0 %1380, %v1130
    %v1382 = vpop.permute.xlu0 %1381
    %1383 = vset.pattern.permute.xlu0 0
    %1384 = vperm.xlu0 %1383, %v1131
    %v1385 = vpop.permute.xlu0 %1384
    %1386 = vset.pattern.permute.xlu0 0
    %1387 = vperm.xlu0 %1386, %v1132
    %v1388 = vpop.permute.xlu0 %1387
    %v1389 = vlaneseq
    %v1390 = vshrl.u32 %v1389, 7
    %v1391 = vsub.s32 %v538, %v1390
    %v1392 = vrot.slane %v1199, %v1391
    %v1393 = vlaneseq
    %v1394 = vshrl.u32 %v1393, 7
    %v1395 = vsub.s32 %v543, %v1394
    %v1396 = vrot.slane %v1202, %v1395
    %v1397 = vsel %vm548, %v1396, %v1392
    %v1398 = vlaneseq
    %v1399 = vshrl.u32 %v1398, 7
    %v1400 = vsub.s32 %v550, %v1399
    %v1401 = vrot.slane %v1205, %v1400
    %v1402 = vsel %vm555, %v1401, %v1397
    %v1403 = vlaneseq
    %v1404 = vshrl.u32 %v1403, 7
    %v1405 = vsub.s32 %v557, %v1404
    %v1406 = vrot.slane %v1208, %v1405
    %v1407 = vsel %vm562, %v1406, %v1402
    %v1408 = vlaneseq
    %v1409 = vshrl.u32 %v1408, 7
    %v1410 = vsub.s32 %v564, %v1409
    %v1411 = vrot.slane %v1211, %v1410
    %v1412 = vsel %vm569, %v1411, %v1407
    %v1413 = vlaneseq
    %v1414 = vshrl.u32 %v1413, 7
    %v1415 = vsub.s32 %v571, %v1414
    %v1416 = vrot.slane %v1214, %v1415
    %v1417 = vsel %vm576, %v1416, %v1412
    %v1418 = vlaneseq
    %v1419 = vshrl.u32 %v1418, 7
    %v1420 = vsub.s32 %v578, %v1419
    %v1421 = vrot.slane %v1217, %v1420
    %v1422 = vsel %vm583, %v1421, %v1417
    %v1423 = vlaneseq
    %v1424 = vshrl.u32 %v1423, 7
    %v1425 = vsub.s32 %v585, %v1424
    %v1426 = vrot.slane %v1220, %v1425
    %v1427 = vsel %vm590, %v1426, %v1422
    %v1428 = vlaneseq
    %v1429 = vshrl.u32 %v1428, 7
    %v1430 = vsub.s32 %v592, %v1429
    %v1431 = vrot.slane %v1223, %v1430
    %v1432 = vsel %vm597, %v1431, %v1427
    %v1433 = vlaneseq
    %v1434 = vshrl.u32 %v1433, 7
    %v1435 = vsub.s32 %v599, %v1434
    %v1436 = vrot.slane %v1226, %v1435
    %v1437 = vsel %vm604, %v1436, %v1432
    %v1438 = vlaneseq
    %v1439 = vshrl.u32 %v1438, 7
    %v1440 = vsub.s32 %v606, %v1439
    %v1441 = vrot.slane %v1229, %v1440
    %v1442 = vsel %vm611, %v1441, %v1437
    %v1443 = vlaneseq
    %v1444 = vshrl.u32 %v1443, 7
    %v1445 = vsub.s32 %v613, %v1444
    %v1446 = vrot.slane %v1232, %v1445
    %v1447 = vsel %vm618, %v1446, %v1442
    %v1448 = vlaneseq
    %v1449 = vshrl.u32 %v1448, 7
    %v1450 = vsub.s32 %v620, %v1449
    %v1451 = vrot.slane %v1235, %v1450
    %v1452 = vsel %vm625, %v1451, %v1447
    %v1453 = vlaneseq
    %v1454 = vshrl.u32 %v1453, 7
    %v1455 = vsub.s32 %v627, %v1454
    %v1456 = vrot.slane %v1238, %v1455
    %v1457 = vsel %vm632, %v1456, %v1452
    %v1458 = vlaneseq
    %v1459 = vshrl.u32 %v1458, 7
    %v1460 = vsub.s32 %v634, %v1459
    %v1461 = vrot.slane %v1241, %v1460
    %v1462 = vsel %vm639, %v1461, %v1457
    %v1463 = vlaneseq
    %v1464 = vshrl.u32 %v1463, 7
    %v1465 = vsub.s32 %v641, %v1464
    %v1466 = vrot.slane %v1244, %v1465
    %v1467 = vsel %vm646, %v1466, %v1462
    %v1468 = vlaneseq
    %v1469 = vshrl.u32 %v1468, 7
    %v1470 = vsub.s32 %v538, %v1469
    %v1471 = vrot.slane %v1247, %v1470
    %v1472 = vlaneseq
    %v1473 = vshrl.u32 %v1472, 7
    %v1474 = vsub.s32 %v543, %v1473
    %v1475 = vrot.slane %v1250, %v1474
    %v1476 = vsel %vm548, %v1475, %v1471
    %v1477 = vlaneseq
    %v1478 = vshrl.u32 %v1477, 7
    %v1479 = vsub.s32 %v550, %v1478
    %v1480 = vrot.slane %v1253, %v1479
    %v1481 = vsel %vm555, %v1480, %v1476
    %v1482 = vlaneseq
    %v1483 = vshrl.u32 %v1482, 7
    %v1484 = vsub.s32 %v557, %v1483
    %v1485 = vrot.slane %v1256, %v1484
    %v1486 = vsel %vm562, %v1485, %v1481
    %v1487 = vlaneseq
    %v1488 = vshrl.u32 %v1487, 7
    %v1489 = vsub.s32 %v564, %v1488
    %v1490 = vrot.slane %v1259, %v1489
    %v1491 = vsel %vm569, %v1490, %v1486
    %v1492 = vlaneseq
    %v1493 = vshrl.u32 %v1492, 7
    %v1494 = vsub.s32 %v571, %v1493
    %v1495 = vrot.slane %v1262, %v1494
    %v1496 = vsel %vm576, %v1495, %v1491
    %v1497 = vlaneseq
    %v1498 = vshrl.u32 %v1497, 7
    %v1499 = vsub.s32 %v578, %v1498
    %v1500 = vrot.slane %v1265, %v1499
    %v1501 = vsel %vm583, %v1500, %v1496
    %v1502 = vlaneseq
    %v1503 = vshrl.u32 %v1502, 7
    %v1504 = vsub.s32 %v585, %v1503
    %v1505 = vrot.slane %v1268, %v1504
    %v1506 = vsel %vm590, %v1505, %v1501
    %v1507 = vlaneseq
    %v1508 = vshrl.u32 %v1507, 7
    %v1509 = vsub.s32 %v592, %v1508
    %v1510 = vrot.slane %v1271, %v1509
    %v1511 = vsel %vm597, %v1510, %v1506
    %v1512 = vlaneseq
    %v1513 = vshrl.u32 %v1512, 7
    %v1514 = vsub.s32 %v599, %v1513
    %v1515 = vrot.slane %v1274, %v1514
    %v1516 = vsel %vm604, %v1515, %v1511
    %v1517 = vlaneseq
    %v1518 = vshrl.u32 %v1517, 7
    %v1519 = vsub.s32 %v606, %v1518
    %v1520 = vrot.slane %v1277, %v1519
    %v1521 = vsel %vm611, %v1520, %v1516
    %v1522 = vlaneseq
    %v1523 = vshrl.u32 %v1522, 7
    %v1524 = vsub.s32 %v613, %v1523
    %v1525 = vrot.slane %v1280, %v1524
    %v1526 = vsel %vm618, %v1525, %v1521
    %v1527 = vlaneseq
    %v1528 = vshrl.u32 %v1527, 7
    %v1529 = vsub.s32 %v620, %v1528
    %v1530 = vrot.slane %v1283, %v1529
    %v1531 = vsel %vm625, %v1530, %v1526
    %v1532 = vlaneseq
    %v1533 = vshrl.u32 %v1532, 7
    %v1534 = vsub.s32 %v627, %v1533
    %v1535 = vrot.slane %v1286, %v1534
    %v1536 = vsel %vm632, %v1535, %v1531
    %v1537 = vlaneseq
    %v1538 = vshrl.u32 %v1537, 7
    %v1539 = vsub.s32 %v634, %v1538
    %v1540 = vrot.slane %v1289, %v1539
    %v1541 = vsel %vm639, %v1540, %v1536
    %v1542 = vlaneseq
    %v1543 = vshrl.u32 %v1542, 7
    %v1544 = vsub.s32 %v641, %v1543
    %v1545 = vrot.slane %v1292, %v1544
    %v1546 = vsel %vm646, %v1545, %v1541
    %v1547 = vlaneseq
    %v1548 = vshrl.u32 %v1547, 7
    %v1549 = vsub.s32 %v538, %v1548
    %v1550 = vrot.slane %v1295, %v1549
    %v1551 = vlaneseq
    %v1552 = vshrl.u32 %v1551, 7
    %v1553 = vsub.s32 %v543, %v1552
    %v1554 = vrot.slane %v1298, %v1553
    %v1555 = vsel %vm548, %v1554, %v1550
    %v1556 = vlaneseq
    %v1557 = vshrl.u32 %v1556, 7
    %v1558 = vsub.s32 %v550, %v1557
    %v1559 = vrot.slane %v1301, %v1558
    %v1560 = vsel %vm555, %v1559, %v1555
    %v1561 = vlaneseq
    %v1562 = vshrl.u32 %v1561, 7
    %v1563 = vsub.s32 %v557, %v1562
    %v1564 = vrot.slane %v1304, %v1563
    %v1565 = vsel %vm562, %v1564, %v1560
    %v1566 = vlaneseq
    %v1567 = vshrl.u32 %v1566, 7
    %v1568 = vsub.s32 %v564, %v1567
    %v1569 = vrot.slane %v1307, %v1568
    %v1570 = vsel %vm569, %v1569, %v1565
    %v1571 = vlaneseq
    %v1572 = vshrl.u32 %v1571, 7
    %v1573 = vsub.s32 %v571, %v1572
    %v1574 = vrot.slane %v1310, %v1573
    %v1575 = vsel %vm576, %v1574, %v1570
    %v1576 = vlaneseq
    %v1577 = vshrl.u32 %v1576, 7
    %v1578 = vsub.s32 %v578, %v1577
    %v1579 = vrot.slane %v1313, %v1578
    %v1580 = vsel %vm583, %v1579, %v1575
    %v1581 = vlaneseq
    %v1582 = vshrl.u32 %v1581, 7
    %v1583 = vsub.s32 %v585, %v1582
    %v1584 = vrot.slane %v1316, %v1583
    %v1585 = vsel %vm590, %v1584, %v1580
    %v1586 = vlaneseq
    %v1587 = vshrl.u32 %v1586, 7
    %v1588 = vsub.s32 %v592, %v1587
    %v1589 = vrot.slane %v1319, %v1588
    %v1590 = vsel %vm597, %v1589, %v1585
    %v1591 = vlaneseq
    %v1592 = vshrl.u32 %v1591, 7
    %v1593 = vsub.s32 %v599, %v1592
    %v1594 = vrot.slane %v1322, %v1593
    %v1595 = vsel %vm604, %v1594, %v1590
    %v1596 = vlaneseq
    %v1597 = vshrl.u32 %v1596, 7
    %v1598 = vsub.s32 %v606, %v1597
    %v1599 = vrot.slane %v1325, %v1598
    %v1600 = vsel %vm611, %v1599, %v1595
    %v1601 = vlaneseq
    %v1602 = vshrl.u32 %v1601, 7
    %v1603 = vsub.s32 %v613, %v1602
    %v1604 = vrot.slane %v1328, %v1603
    %v1605 = vsel %vm618, %v1604, %v1600
    %v1606 = vlaneseq
    %v1607 = vshrl.u32 %v1606, 7
    %v1608 = vsub.s32 %v620, %v1607
    %v1609 = vrot.slane %v1331, %v1608
    %v1610 = vsel %vm625, %v1609, %v1605
    %v1611 = vlaneseq
    %v1612 = vshrl.u32 %v1611, 7
    %v1613 = vsub.s32 %v627, %v1612
    %v1614 = vrot.slane %v1334, %v1613
    %v1615 = vsel %vm632, %v1614, %v1610
    %v1616 = vlaneseq
    %v1617 = vshrl.u32 %v1616, 7
    %v1618 = vsub.s32 %v634, %v1617
    %v1619 = vrot.slane %v1337, %v1618
    %v1620 = vsel %vm639, %v1619, %v1615
    %v1621 = vlaneseq
    %v1622 = vshrl.u32 %v1621, 7
    %v1623 = vsub.s32 %v641, %v1622
    %v1624 = vrot.slane %v1340, %v1623
    %v1625 = vsel %vm646, %v1624, %v1620
    %v1626 = vlaneseq
    %v1627 = vshrl.u32 %v1626, 7
    %v1628 = vsub.s32 %v538, %v1627
    %v1629 = vrot.slane %v1343, %v1628
    %v1630 = vlaneseq
    %v1631 = vshrl.u32 %v1630, 7
    %v1632 = vsub.s32 %v543, %v1631
    %v1633 = vrot.slane %v1346, %v1632
    %v1634 = vsel %vm548, %v1633, %v1629
    %v1635 = vlaneseq
    %v1636 = vshrl.u32 %v1635, 7
    %v1637 = vsub.s32 %v550, %v1636
    %v1638 = vrot.slane %v1349, %v1637
    %v1639 = vsel %vm555, %v1638, %v1634
    %v1640 = vlaneseq
    %v1641 = vshrl.u32 %v1640, 7
    %v1642 = vsub.s32 %v557, %v1641
    %v1643 = vrot.slane %v1352, %v1642
    %v1644 = vsel %vm562, %v1643, %v1639
    %v1645 = vlaneseq
    %v1646 = vshrl.u32 %v1645, 7
    %v1647 = vsub.s32 %v564, %v1646
    %v1648 = vrot.slane %v1355, %v1647
    %v1649 = vsel %vm569, %v1648, %v1644
    %v1650 = vlaneseq
    %v1651 = vshrl.u32 %v1650, 7
    %v1652 = vsub.s32 %v571, %v1651
    %v1653 = vrot.slane %v1358, %v1652
    %v1654 = vsel %vm576, %v1653, %v1649
    %v1655 = vlaneseq
    %v1656 = vshrl.u32 %v1655, 7
    %v1657 = vsub.s32 %v578, %v1656
    %v1658 = vrot.slane %v1361, %v1657
    %v1659 = vsel %vm583, %v1658, %v1654
    %v1660 = vlaneseq
    %v1661 = vshrl.u32 %v1660, 7
    %v1662 = vsub.s32 %v585, %v1661
    %v1663 = vrot.slane %v1364, %v1662
    %v1664 = vsel %vm590, %v1663, %v1659
    %v1665 = vlaneseq
    %v1666 = vshrl.u32 %v1665, 7
    %v1667 = vsub.s32 %v592, %v1666
    %v1668 = vrot.slane %v1367, %v1667
    %v1669 = vsel %vm597, %v1668, %v1664
    %v1670 = vlaneseq
    %v1671 = vshrl.u32 %v1670, 7
    %v1672 = vsub.s32 %v599, %v1671
    %v1673 = vrot.slane %v1370, %v1672
    %v1674 = vsel %vm604, %v1673, %v1669
    %v1675 = vlaneseq
    %v1676 = vshrl.u32 %v1675, 7
    %v1677 = vsub.s32 %v606, %v1676
    %v1678 = vrot.slane %v1373, %v1677
    %v1679 = vsel %vm611, %v1678, %v1674
    %v1680 = vlaneseq
    %v1681 = vshrl.u32 %v1680, 7
    %v1682 = vsub.s32 %v613, %v1681
    %v1683 = vrot.slane %v1376, %v1682
    %v1684 = vsel %vm618, %v1683, %v1679
    %v1685 = vlaneseq
    %v1686 = vshrl.u32 %v1685, 7
    %v1687 = vsub.s32 %v620, %v1686
    %v1688 = vrot.slane %v1379, %v1687
    %v1689 = vsel %vm625, %v1688, %v1684
    %v1690 = vlaneseq
    %v1691 = vshrl.u32 %v1690, 7
    %v1692 = vsub.s32 %v627, %v1691
    %v1693 = vrot.slane %v1382, %v1692
    %v1694 = vsel %vm632, %v1693, %v1689
    %v1695 = vlaneseq
    %v1696 = vshrl.u32 %v1695, 7
    %v1697 = vsub.s32 %v634, %v1696
    %v1698 = vrot.slane %v1385, %v1697
    %v1699 = vsel %vm639, %v1698, %v1694
    %v1700 = vlaneseq
    %v1701 = vshrl.u32 %v1700, 7
    %v1702 = vsub.s32 %v641, %v1701
    %v1703 = vrot.slane %v1388, %v1702
    %v1704 = vsel %vm646, %v1703, %v1699
    %v1705 = vsel %vm885, %v1625, %v1467
    %v1706 = vsel %vm885, %v1704, %v1546
    %v1709 = vadd.f32 %v890, %v1705
    %v1710 = vadd.f32 %v891, %v1706
    %s1711 = scalar_lea.vmem %s1, 2
    %v1712 = vld [vmem:[%s1711] ss:$4 sm:$0x3]
    %v1713 = vlaneseq
    %v1714 = vshrl.u32 %v1713, 7
    %v1715 = vsub.s32 2, %v1714
    %v1716 = vrot.slane %v27, %v1715
    %v1717 = vlaneseq
    %v1718 = vshrl.u32 %v1717, 7
    %v1719 = vsub.s32 2, %v1718
    %v1720 = vrot.slane %v28, %v1719
    %v1722 = vlaneseq
    %v1723 = vshrl.u32 %v1722, 7
    %v1724 = vsub.s32 0, %v1723
    %v1725 = vrot.slane %v1712, %v1724
    %v1726 = vlaneseq
    %v1727 = vshrl.u32 %v1726, 7
    %v1728 = vsub.s32 1, %v1727
    %v1729 = vrot.slane %v1712, %v1728
    %1731 = vbcast.lane.b32.xlu0 %v1725, 256
    %v1732 = vpop.permute.xlu0 %1731
    %s1734 = sor.u32 256, 8
    %1735 = vbcast.lane.b32.xlu0 %v1725, %s1734
    %v1736 = vpop.permute.xlu0 %1735
    %s1738 = sor.u32 256, 16
    %1739 = vbcast.lane.b32.xlu0 %v1725, %s1738
    %v1740 = vpop.permute.xlu0 %1739
    %s1742 = sor.u32 256, 24
    %1743 = vbcast.lane.b32.xlu0 %v1725, %s1742
    %v1744 = vpop.permute.xlu0 %1743
    %s1746 = sor.u32 256, 32
    %1747 = vbcast.lane.b32.xlu0 %v1725, %s1746
    %v1748 = vpop.permute.xlu0 %1747
    %s1750 = sor.u32 256, 40
    %1751 = vbcast.lane.b32.xlu0 %v1725, %s1750
    %v1752 = vpop.permute.xlu0 %1751
    %s1754 = sor.u32 256, 48
    %1755 = vbcast.lane.b32.xlu0 %v1725, %s1754
    %v1756 = vpop.permute.xlu0 %1755
    %s1758 = sor.u32 256, 56
    %1759 = vbcast.lane.b32.xlu0 %v1725, %s1758
    %v1760 = vpop.permute.xlu0 %1759
    %s1762 = sor.u32 256, 64
    %1763 = vbcast.lane.b32.xlu0 %v1725, %s1762
    %v1764 = vpop.permute.xlu0 %1763
    %s1766 = sor.u32 256, 72
    %1767 = vbcast.lane.b32.xlu0 %v1725, %s1766
    %v1768 = vpop.permute.xlu0 %1767
    %s1770 = sor.u32 256, 80
    %1771 = vbcast.lane.b32.xlu0 %v1725, %s1770
    %v1772 = vpop.permute.xlu0 %1771
    %s1774 = sor.u32 256, 88
    %1775 = vbcast.lane.b32.xlu0 %v1725, %s1774
    %v1776 = vpop.permute.xlu0 %1775
    %s1778 = sor.u32 256, 96
    %1779 = vbcast.lane.b32.xlu0 %v1725, %s1778
    %v1780 = vpop.permute.xlu0 %1779
    %s1782 = sor.u32 256, 104
    %1783 = vbcast.lane.b32.xlu0 %v1725, %s1782
    %v1784 = vpop.permute.xlu0 %1783
    %s1786 = sor.u32 256, 112
    %1787 = vbcast.lane.b32.xlu0 %v1725, %s1786
    %v1788 = vpop.permute.xlu0 %1787
    %s1790 = sor.u32 256, 120
    %1791 = vbcast.lane.b32.xlu0 %v1725, %s1790
    %v1792 = vpop.permute.xlu0 %1791
    %1794 = vbcast.lane.b32.xlu0 %v1729, 256
    %v1795 = vpop.permute.xlu0 %1794
    %s1797 = sor.u32 256, 8
    %1798 = vbcast.lane.b32.xlu0 %v1729, %s1797
    %v1799 = vpop.permute.xlu0 %1798
    %s1801 = sor.u32 256, 16
    %1802 = vbcast.lane.b32.xlu0 %v1729, %s1801
    %v1803 = vpop.permute.xlu0 %1802
    %s1805 = sor.u32 256, 24
    %1806 = vbcast.lane.b32.xlu0 %v1729, %s1805
    %v1807 = vpop.permute.xlu0 %1806
    %s1809 = sor.u32 256, 32
    %1810 = vbcast.lane.b32.xlu0 %v1729, %s1809
    %v1811 = vpop.permute.xlu0 %1810
    %s1813 = sor.u32 256, 40
    %1814 = vbcast.lane.b32.xlu0 %v1729, %s1813
    %v1815 = vpop.permute.xlu0 %1814
    %s1817 = sor.u32 256, 48
    %1818 = vbcast.lane.b32.xlu0 %v1729, %s1817
    %v1819 = vpop.permute.xlu0 %1818
    %s1821 = sor.u32 256, 56
    %1822 = vbcast.lane.b32.xlu0 %v1729, %s1821
    %v1823 = vpop.permute.xlu0 %1822
    %s1825 = sor.u32 256, 64
    %1826 = vbcast.lane.b32.xlu0 %v1729, %s1825
    %v1827 = vpop.permute.xlu0 %1826
    %s1829 = sor.u32 256, 72
    %1830 = vbcast.lane.b32.xlu0 %v1729, %s1829
    %v1831 = vpop.permute.xlu0 %1830
    %s1833 = sor.u32 256, 80
    %1834 = vbcast.lane.b32.xlu0 %v1729, %s1833
    %v1835 = vpop.permute.xlu0 %1834
    %s1837 = sor.u32 256, 88
    %1838 = vbcast.lane.b32.xlu0 %v1729, %s1837
    %v1839 = vpop.permute.xlu0 %1838
    %s1841 = sor.u32 256, 96
    %1842 = vbcast.lane.b32.xlu0 %v1729, %s1841
    %v1843 = vpop.permute.xlu0 %1842
    %s1845 = sor.u32 256, 104
    %1846 = vbcast.lane.b32.xlu0 %v1729, %s1845
    %v1847 = vpop.permute.xlu0 %1846
    %s1849 = sor.u32 256, 112
    %1850 = vbcast.lane.b32.xlu0 %v1729, %s1849
    %v1851 = vpop.permute.xlu0 %1850
    %s1853 = sor.u32 256, 120
    %1854 = vbcast.lane.b32.xlu0 %v1729, %s1853
    %v1855 = vpop.permute.xlu0 %1854
    %v1888 = vmul.f32 %v1716, %v1732
    %v1889 = vmul.f32 %v1716, %v1736
    %v1890 = vmul.f32 %v1716, %v1740
    %v1891 = vmul.f32 %v1716, %v1744
    %v1892 = vmul.f32 %v1716, %v1748
    %v1893 = vmul.f32 %v1716, %v1752
    %v1894 = vmul.f32 %v1716, %v1756
    %v1895 = vmul.f32 %v1716, %v1760
    %v1896 = vmul.f32 %v1716, %v1764
    %v1897 = vmul.f32 %v1716, %v1768
    %v1898 = vmul.f32 %v1716, %v1772
    %v1899 = vmul.f32 %v1716, %v1776
    %v1900 = vmul.f32 %v1716, %v1780
    %v1901 = vmul.f32 %v1716, %v1784
    %v1902 = vmul.f32 %v1716, %v1788
    %v1903 = vmul.f32 %v1716, %v1792
    %v1904 = vmul.f32 %v1716, %v1795
    %v1905 = vmul.f32 %v1716, %v1799
    %v1906 = vmul.f32 %v1716, %v1803
    %v1907 = vmul.f32 %v1716, %v1807
    %v1908 = vmul.f32 %v1716, %v1811
    %v1909 = vmul.f32 %v1716, %v1815
    %v1910 = vmul.f32 %v1716, %v1819
    %v1911 = vmul.f32 %v1716, %v1823
    %v1912 = vmul.f32 %v1716, %v1827
    %v1913 = vmul.f32 %v1716, %v1831
    %v1914 = vmul.f32 %v1716, %v1835
    %v1915 = vmul.f32 %v1716, %v1839
    %v1916 = vmul.f32 %v1716, %v1843
    %v1917 = vmul.f32 %v1716, %v1847
    %v1918 = vmul.f32 %v1716, %v1851
    %v1919 = vmul.f32 %v1716, %v1855
    %v1920 = vmul.f32 %v1720, %v1732
    %v1921 = vmul.f32 %v1720, %v1736
    %v1922 = vmul.f32 %v1720, %v1740
    %v1923 = vmul.f32 %v1720, %v1744
    %v1924 = vmul.f32 %v1720, %v1748
    %v1925 = vmul.f32 %v1720, %v1752
    %v1926 = vmul.f32 %v1720, %v1756
    %v1927 = vmul.f32 %v1720, %v1760
    %v1928 = vmul.f32 %v1720, %v1764
    %v1929 = vmul.f32 %v1720, %v1768
    %v1930 = vmul.f32 %v1720, %v1772
    %v1931 = vmul.f32 %v1720, %v1776
    %v1932 = vmul.f32 %v1720, %v1780
    %v1933 = vmul.f32 %v1720, %v1784
    %v1934 = vmul.f32 %v1720, %v1788
    %v1935 = vmul.f32 %v1720, %v1792
    %v1936 = vmul.f32 %v1720, %v1795
    %v1937 = vmul.f32 %v1720, %v1799
    %v1938 = vmul.f32 %v1720, %v1803
    %v1939 = vmul.f32 %v1720, %v1807
    %v1940 = vmul.f32 %v1720, %v1811
    %v1941 = vmul.f32 %v1720, %v1815
    %v1942 = vmul.f32 %v1720, %v1819
    %v1943 = vmul.f32 %v1720, %v1823
    %v1944 = vmul.f32 %v1720, %v1827
    %v1945 = vmul.f32 %v1720, %v1831
    %v1946 = vmul.f32 %v1720, %v1835
    %v1947 = vmul.f32 %v1720, %v1839
    %v1948 = vmul.f32 %v1720, %v1843
    %v1949 = vmul.f32 %v1720, %v1847
    %v1950 = vmul.f32 %v1720, %v1851
    %v1951 = vmul.f32 %v1720, %v1855
    %2016 = vset.pattern.permute.xlu0 0
    %2017 = vperm.xlu0 %2016, %v1888
    %v2018 = vpop.permute.xlu0 %2017
    %2019 = vset.pattern.permute.xlu0 0
    %2020 = vperm.xlu0 %2019, %v1889
    %v2021 = vpop.permute.xlu0 %2020
    %2022 = vset.pattern.permute.xlu0 0
    %2023 = vperm.xlu0 %2022, %v1890
    %v2024 = vpop.permute.xlu0 %2023
    %2025 = vset.pattern.permute.xlu0 0
    %2026 = vperm.xlu0 %2025, %v1891
    %v2027 = vpop.permute.xlu0 %2026
    %2028 = vset.pattern.permute.xlu0 0
    %2029 = vperm.xlu0 %2028, %v1892
    %v2030 = vpop.permute.xlu0 %2029
    %2031 = vset.pattern.permute.xlu0 0
    %2032 = vperm.xlu0 %2031, %v1893
    %v2033 = vpop.permute.xlu0 %2032
    %2034 = vset.pattern.permute.xlu0 0
    %2035 = vperm.xlu0 %2034, %v1894
    %v2036 = vpop.permute.xlu0 %2035
    %2037 = vset.pattern.permute.xlu0 0
    %2038 = vperm.xlu0 %2037, %v1895
    %v2039 = vpop.permute.xlu0 %2038
    %2040 = vset.pattern.permute.xlu0 0
    %2041 = vperm.xlu0 %2040, %v1896
    %v2042 = vpop.permute.xlu0 %2041
    %2043 = vset.pattern.permute.xlu0 0
    %2044 = vperm.xlu0 %2043, %v1897
    %v2045 = vpop.permute.xlu0 %2044
    %2046 = vset.pattern.permute.xlu0 0
    %2047 = vperm.xlu0 %2046, %v1898
    %v2048 = vpop.permute.xlu0 %2047
    %2049 = vset.pattern.permute.xlu0 0
    %2050 = vperm.xlu0 %2049, %v1899
    %v2051 = vpop.permute.xlu0 %2050
    %2052 = vset.pattern.permute.xlu0 0
    %2053 = vperm.xlu0 %2052, %v1900
    %v2054 = vpop.permute.xlu0 %2053
    %2055 = vset.pattern.permute.xlu0 0
    %2056 = vperm.xlu0 %2055, %v1901
    %v2057 = vpop.permute.xlu0 %2056
    %2058 = vset.pattern.permute.xlu0 0
    %2059 = vperm.xlu0 %2058, %v1902
    %v2060 = vpop.permute.xlu0 %2059
    %2061 = vset.pattern.permute.xlu0 0
    %2062 = vperm.xlu0 %2061, %v1903
    %v2063 = vpop.permute.xlu0 %2062
    %2064 = vset.pattern.permute.xlu0 0
    %2065 = vperm.xlu0 %2064, %v1904
    %v2066 = vpop.permute.xlu0 %2065
    %2067 = vset.pattern.permute.xlu0 0
    %2068 = vperm.xlu0 %2067, %v1905
    %v2069 = vpop.permute.xlu0 %2068
    %2070 = vset.pattern.permute.xlu0 0
    %2071 = vperm.xlu0 %2070, %v1906
    %v2072 = vpop.permute.xlu0 %2071
    %2073 = vset.pattern.permute.xlu0 0
    %2074 = vperm.xlu0 %2073, %v1907
    %v2075 = vpop.permute.xlu0 %2074
    %2076 = vset.pattern.permute.xlu0 0
    %2077 = vperm.xlu0 %2076, %v1908
    %v2078 = vpop.permute.xlu0 %2077
    %2079 = vset.pattern.permute.xlu0 0
    %2080 = vperm.xlu0 %2079, %v1909
    %v2081 = vpop.permute.xlu0 %2080
    %2082 = vset.pattern.permute.xlu0 0
    %2083 = vperm.xlu0 %2082, %v1910
    %v2084 = vpop.permute.xlu0 %2083
    %2085 = vset.pattern.permute.xlu0 0
    %2086 = vperm.xlu0 %2085, %v1911
    %v2087 = vpop.permute.xlu0 %2086
    %2088 = vset.pattern.permute.xlu0 0
    %2089 = vperm.xlu0 %2088, %v1912
    %v2090 = vpop.permute.xlu0 %2089
    %2091 = vset.pattern.permute.xlu0 0
    %2092 = vperm.xlu0 %2091, %v1913
    %v2093 = vpop.permute.xlu0 %2092
    %2094 = vset.pattern.permute.xlu0 0
    %2095 = vperm.xlu0 %2094, %v1914
    %v2096 = vpop.permute.xlu0 %2095
    %2097 = vset.pattern.permute.xlu0 0
    %2098 = vperm.xlu0 %2097, %v1915
    %v2099 = vpop.permute.xlu0 %2098
    %2100 = vset.pattern.permute.xlu0 0
    %2101 = vperm.xlu0 %2100, %v1916
    %v2102 = vpop.permute.xlu0 %2101
    %2103 = vset.pattern.permute.xlu0 0
    %2104 = vperm.xlu0 %2103, %v1917
    %v2105 = vpop.permute.xlu0 %2104
    %2106 = vset.pattern.permute.xlu0 0
    %2107 = vperm.xlu0 %2106, %v1918
    %v2108 = vpop.permute.xlu0 %2107
    %2109 = vset.pattern.permute.xlu0 0
    %2110 = vperm.xlu0 %2109, %v1919
    %v2111 = vpop.permute.xlu0 %2110
    %2112 = vset.pattern.permute.xlu0 0
    %2113 = vperm.xlu0 %2112, %v1920
    %v2114 = vpop.permute.xlu0 %2113
    %2115 = vset.pattern.permute.xlu0 0
    %2116 = vperm.xlu0 %2115, %v1921
    %v2117 = vpop.permute.xlu0 %2116
    %2118 = vset.pattern.permute.xlu0 0
    %2119 = vperm.xlu0 %2118, %v1922
    %v2120 = vpop.permute.xlu0 %2119
    %2121 = vset.pattern.permute.xlu0 0
    %2122 = vperm.xlu0 %2121, %v1923
    %v2123 = vpop.permute.xlu0 %2122
    %2124 = vset.pattern.permute.xlu0 0
    %2125 = vperm.xlu0 %2124, %v1924
    %v2126 = vpop.permute.xlu0 %2125
    %2127 = vset.pattern.permute.xlu0 0
    %2128 = vperm.xlu0 %2127, %v1925
    %v2129 = vpop.permute.xlu0 %2128
    %2130 = vset.pattern.permute.xlu0 0
    %2131 = vperm.xlu0 %2130, %v1926
    %v2132 = vpop.permute.xlu0 %2131
    %2133 = vset.pattern.permute.xlu0 0
    %2134 = vperm.xlu0 %2133, %v1927
    %v2135 = vpop.permute.xlu0 %2134
    %2136 = vset.pattern.permute.xlu0 0
    %2137 = vperm.xlu0 %2136, %v1928
    %v2138 = vpop.permute.xlu0 %2137
    %2139 = vset.pattern.permute.xlu0 0
    %2140 = vperm.xlu0 %2139, %v1929
    %v2141 = vpop.permute.xlu0 %2140
    %2142 = vset.pattern.permute.xlu0 0
    %2143 = vperm.xlu0 %2142, %v1930
    %v2144 = vpop.permute.xlu0 %2143
    %2145 = vset.pattern.permute.xlu0 0
    %2146 = vperm.xlu0 %2145, %v1931
    %v2147 = vpop.permute.xlu0 %2146
    %2148 = vset.pattern.permute.xlu0 0
    %2149 = vperm.xlu0 %2148, %v1932
    %v2150 = vpop.permute.xlu0 %2149
    %2151 = vset.pattern.permute.xlu0 0
    %2152 = vperm.xlu0 %2151, %v1933
    %v2153 = vpop.permute.xlu0 %2152
    %2154 = vset.pattern.permute.xlu0 0
    %2155 = vperm.xlu0 %2154, %v1934
    %v2156 = vpop.permute.xlu0 %2155
    %2157 = vset.pattern.permute.xlu0 0
    %2158 = vperm.xlu0 %2157, %v1935
    %v2159 = vpop.permute.xlu0 %2158
    %2160 = vset.pattern.permute.xlu0 0
    %2161 = vperm.xlu0 %2160, %v1936
    %v2162 = vpop.permute.xlu0 %2161
    %2163 = vset.pattern.permute.xlu0 0
    %2164 = vperm.xlu0 %2163, %v1937
    %v2165 = vpop.permute.xlu0 %2164
    %2166 = vset.pattern.permute.xlu0 0
    %2167 = vperm.xlu0 %2166, %v1938
    %v2168 = vpop.permute.xlu0 %2167
    %2169 = vset.pattern.permute.xlu0 0
    %2170 = vperm.xlu0 %2169, %v1939
    %v2171 = vpop.permute.xlu0 %2170
    %2172 = vset.pattern.permute.xlu0 0
    %2173 = vperm.xlu0 %2172, %v1940
    %v2174 = vpop.permute.xlu0 %2173
    %2175 = vset.pattern.permute.xlu0 0
    %2176 = vperm.xlu0 %2175, %v1941
    %v2177 = vpop.permute.xlu0 %2176
    %2178 = vset.pattern.permute.xlu0 0
    %2179 = vperm.xlu0 %2178, %v1942
    %v2180 = vpop.permute.xlu0 %2179
    %2181 = vset.pattern.permute.xlu0 0
    %2182 = vperm.xlu0 %2181, %v1943
    %v2183 = vpop.permute.xlu0 %2182
    %2184 = vset.pattern.permute.xlu0 0
    %2185 = vperm.xlu0 %2184, %v1944
    %v2186 = vpop.permute.xlu0 %2185
    %2187 = vset.pattern.permute.xlu0 0
    %2188 = vperm.xlu0 %2187, %v1945
    %v2189 = vpop.permute.xlu0 %2188
    %2190 = vset.pattern.permute.xlu0 0
    %2191 = vperm.xlu0 %2190, %v1946
    %v2192 = vpop.permute.xlu0 %2191
    %2193 = vset.pattern.permute.xlu0 0
    %2194 = vperm.xlu0 %2193, %v1947
    %v2195 = vpop.permute.xlu0 %2194
    %2196 = vset.pattern.permute.xlu0 0
    %2197 = vperm.xlu0 %2196, %v1948
    %v2198 = vpop.permute.xlu0 %2197
    %2199 = vset.pattern.permute.xlu0 0
    %2200 = vperm.xlu0 %2199, %v1949
    %v2201 = vpop.permute.xlu0 %2200
    %2202 = vset.pattern.permute.xlu0 0
    %2203 = vperm.xlu0 %2202, %v1950
    %v2204 = vpop.permute.xlu0 %2203
    %2205 = vset.pattern.permute.xlu0 0
    %2206 = vperm.xlu0 %2205, %v1951
    %v2207 = vpop.permute.xlu0 %2206
    %v2208 = vlaneseq
    %v2209 = vshrl.u32 %v2208, 7
    %v2210 = vsub.s32 %v538, %v2209
    %v2211 = vrot.slane %v2018, %v2210
    %v2212 = vlaneseq
    %v2213 = vshrl.u32 %v2212, 7
    %v2214 = vsub.s32 %v543, %v2213
    %v2215 = vrot.slane %v2021, %v2214
    %v2216 = vsel %vm548, %v2215, %v2211
    %v2217 = vlaneseq
    %v2218 = vshrl.u32 %v2217, 7
    %v2219 = vsub.s32 %v550, %v2218
    %v2220 = vrot.slane %v2024, %v2219
    %v2221 = vsel %vm555, %v2220, %v2216
    %v2222 = vlaneseq
    %v2223 = vshrl.u32 %v2222, 7
    %v2224 = vsub.s32 %v557, %v2223
    %v2225 = vrot.slane %v2027, %v2224
    %v2226 = vsel %vm562, %v2225, %v2221
    %v2227 = vlaneseq
    %v2228 = vshrl.u32 %v2227, 7
    %v2229 = vsub.s32 %v564, %v2228
    %v2230 = vrot.slane %v2030, %v2229
    %v2231 = vsel %vm569, %v2230, %v2226
    %v2232 = vlaneseq
    %v2233 = vshrl.u32 %v2232, 7
    %v2234 = vsub.s32 %v571, %v2233
    %v2235 = vrot.slane %v2033, %v2234
    %v2236 = vsel %vm576, %v2235, %v2231
    %v2237 = vlaneseq
    %v2238 = vshrl.u32 %v2237, 7
    %v2239 = vsub.s32 %v578, %v2238
    %v2240 = vrot.slane %v2036, %v2239
    %v2241 = vsel %vm583, %v2240, %v2236
    %v2242 = vlaneseq
    %v2243 = vshrl.u32 %v2242, 7
    %v2244 = vsub.s32 %v585, %v2243
    %v2245 = vrot.slane %v2039, %v2244
    %v2246 = vsel %vm590, %v2245, %v2241
    %v2247 = vlaneseq
    %v2248 = vshrl.u32 %v2247, 7
    %v2249 = vsub.s32 %v592, %v2248
    %v2250 = vrot.slane %v2042, %v2249
    %v2251 = vsel %vm597, %v2250, %v2246
    %v2252 = vlaneseq
    %v2253 = vshrl.u32 %v2252, 7
    %v2254 = vsub.s32 %v599, %v2253
    %v2255 = vrot.slane %v2045, %v2254
    %v2256 = vsel %vm604, %v2255, %v2251
    %v2257 = vlaneseq
    %v2258 = vshrl.u32 %v2257, 7
    %v2259 = vsub.s32 %v606, %v2258
    %v2260 = vrot.slane %v2048, %v2259
    %v2261 = vsel %vm611, %v2260, %v2256
    %v2262 = vlaneseq
    %v2263 = vshrl.u32 %v2262, 7
    %v2264 = vsub.s32 %v613, %v2263
    %v2265 = vrot.slane %v2051, %v2264
    %v2266 = vsel %vm618, %v2265, %v2261
    %v2267 = vlaneseq
    %v2268 = vshrl.u32 %v2267, 7
    %v2269 = vsub.s32 %v620, %v2268
    %v2270 = vrot.slane %v2054, %v2269
    %v2271 = vsel %vm625, %v2270, %v2266
    %v2272 = vlaneseq
    %v2273 = vshrl.u32 %v2272, 7
    %v2274 = vsub.s32 %v627, %v2273
    %v2275 = vrot.slane %v2057, %v2274
    %v2276 = vsel %vm632, %v2275, %v2271
    %v2277 = vlaneseq
    %v2278 = vshrl.u32 %v2277, 7
    %v2279 = vsub.s32 %v634, %v2278
    %v2280 = vrot.slane %v2060, %v2279
    %v2281 = vsel %vm639, %v2280, %v2276
    %v2282 = vlaneseq
    %v2283 = vshrl.u32 %v2282, 7
    %v2284 = vsub.s32 %v641, %v2283
    %v2285 = vrot.slane %v2063, %v2284
    %v2286 = vsel %vm646, %v2285, %v2281
    %v2287 = vlaneseq
    %v2288 = vshrl.u32 %v2287, 7
    %v2289 = vsub.s32 %v538, %v2288
    %v2290 = vrot.slane %v2066, %v2289
    %v2291 = vlaneseq
    %v2292 = vshrl.u32 %v2291, 7
    %v2293 = vsub.s32 %v543, %v2292
    %v2294 = vrot.slane %v2069, %v2293
    %v2295 = vsel %vm548, %v2294, %v2290
    %v2296 = vlaneseq
    %v2297 = vshrl.u32 %v2296, 7
    %v2298 = vsub.s32 %v550, %v2297
    %v2299 = vrot.slane %v2072, %v2298
    %v2300 = vsel %vm555, %v2299, %v2295
    %v2301 = vlaneseq
    %v2302 = vshrl.u32 %v2301, 7
    %v2303 = vsub.s32 %v557, %v2302
    %v2304 = vrot.slane %v2075, %v2303
    %v2305 = vsel %vm562, %v2304, %v2300
    %v2306 = vlaneseq
    %v2307 = vshrl.u32 %v2306, 7
    %v2308 = vsub.s32 %v564, %v2307
    %v2309 = vrot.slane %v2078, %v2308
    %v2310 = vsel %vm569, %v2309, %v2305
    %v2311 = vlaneseq
    %v2312 = vshrl.u32 %v2311, 7
    %v2313 = vsub.s32 %v571, %v2312
    %v2314 = vrot.slane %v2081, %v2313
    %v2315 = vsel %vm576, %v2314, %v2310
    %v2316 = vlaneseq
    %v2317 = vshrl.u32 %v2316, 7
    %v2318 = vsub.s32 %v578, %v2317
    %v2319 = vrot.slane %v2084, %v2318
    %v2320 = vsel %vm583, %v2319, %v2315
    %v2321 = vlaneseq
    %v2322 = vshrl.u32 %v2321, 7
    %v2323 = vsub.s32 %v585, %v2322
    %v2324 = vrot.slane %v2087, %v2323
    %v2325 = vsel %vm590, %v2324, %v2320
    %v2326 = vlaneseq
    %v2327 = vshrl.u32 %v2326, 7
    %v2328 = vsub.s32 %v592, %v2327
    %v2329 = vrot.slane %v2090, %v2328
    %v2330 = vsel %vm597, %v2329, %v2325
    %v2331 = vlaneseq
    %v2332 = vshrl.u32 %v2331, 7
    %v2333 = vsub.s32 %v599, %v2332
    %v2334 = vrot.slane %v2093, %v2333
    %v2335 = vsel %vm604, %v2334, %v2330
    %v2336 = vlaneseq
    %v2337 = vshrl.u32 %v2336, 7
    %v2338 = vsub.s32 %v606, %v2337
    %v2339 = vrot.slane %v2096, %v2338
    %v2340 = vsel %vm611, %v2339, %v2335
    %v2341 = vlaneseq
    %v2342 = vshrl.u32 %v2341, 7
    %v2343 = vsub.s32 %v613, %v2342
    %v2344 = vrot.slane %v2099, %v2343
    %v2345 = vsel %vm618, %v2344, %v2340
    %v2346 = vlaneseq
    %v2347 = vshrl.u32 %v2346, 7
    %v2348 = vsub.s32 %v620, %v2347
    %v2349 = vrot.slane %v2102, %v2348
    %v2350 = vsel %vm625, %v2349, %v2345
    %v2351 = vlaneseq
    %v2352 = vshrl.u32 %v2351, 7
    %v2353 = vsub.s32 %v627, %v2352
    %v2354 = vrot.slane %v2105, %v2353
    %v2355 = vsel %vm632, %v2354, %v2350
    %v2356 = vlaneseq
    %v2357 = vshrl.u32 %v2356, 7
    %v2358 = vsub.s32 %v634, %v2357
    %v2359 = vrot.slane %v2108, %v2358
    %v2360 = vsel %vm639, %v2359, %v2355
    %v2361 = vlaneseq
    %v2362 = vshrl.u32 %v2361, 7
    %v2363 = vsub.s32 %v641, %v2362
    %v2364 = vrot.slane %v2111, %v2363
    %v2365 = vsel %vm646, %v2364, %v2360
    %v2366 = vlaneseq
    %v2367 = vshrl.u32 %v2366, 7
    %v2368 = vsub.s32 %v538, %v2367
    %v2369 = vrot.slane %v2114, %v2368
    %v2370 = vlaneseq
    %v2371 = vshrl.u32 %v2370, 7
    %v2372 = vsub.s32 %v543, %v2371
    %v2373 = vrot.slane %v2117, %v2372
    %v2374 = vsel %vm548, %v2373, %v2369
    %v2375 = vlaneseq
    %v2376 = vshrl.u32 %v2375, 7
    %v2377 = vsub.s32 %v550, %v2376
    %v2378 = vrot.slane %v2120, %v2377
    %v2379 = vsel %vm555, %v2378, %v2374
    %v2380 = vlaneseq
    %v2381 = vshrl.u32 %v2380, 7
    %v2382 = vsub.s32 %v557, %v2381
    %v2383 = vrot.slane %v2123, %v2382
    %v2384 = vsel %vm562, %v2383, %v2379
    %v2385 = vlaneseq
    %v2386 = vshrl.u32 %v2385, 7
    %v2387 = vsub.s32 %v564, %v2386
    %v2388 = vrot.slane %v2126, %v2387
    %v2389 = vsel %vm569, %v2388, %v2384
    %v2390 = vlaneseq
    %v2391 = vshrl.u32 %v2390, 7
    %v2392 = vsub.s32 %v571, %v2391
    %v2393 = vrot.slane %v2129, %v2392
    %v2394 = vsel %vm576, %v2393, %v2389
    %v2395 = vlaneseq
    %v2396 = vshrl.u32 %v2395, 7
    %v2397 = vsub.s32 %v578, %v2396
    %v2398 = vrot.slane %v2132, %v2397
    %v2399 = vsel %vm583, %v2398, %v2394
    %v2400 = vlaneseq
    %v2401 = vshrl.u32 %v2400, 7
    %v2402 = vsub.s32 %v585, %v2401
    %v2403 = vrot.slane %v2135, %v2402
    %v2404 = vsel %vm590, %v2403, %v2399
    %v2405 = vlaneseq
    %v2406 = vshrl.u32 %v2405, 7
    %v2407 = vsub.s32 %v592, %v2406
    %v2408 = vrot.slane %v2138, %v2407
    %v2409 = vsel %vm597, %v2408, %v2404
    %v2410 = vlaneseq
    %v2411 = vshrl.u32 %v2410, 7
    %v2412 = vsub.s32 %v599, %v2411
    %v2413 = vrot.slane %v2141, %v2412
    %v2414 = vsel %vm604, %v2413, %v2409
    %v2415 = vlaneseq
    %v2416 = vshrl.u32 %v2415, 7
    %v2417 = vsub.s32 %v606, %v2416
    %v2418 = vrot.slane %v2144, %v2417
    %v2419 = vsel %vm611, %v2418, %v2414
    %v2420 = vlaneseq
    %v2421 = vshrl.u32 %v2420, 7
    %v2422 = vsub.s32 %v613, %v2421
    %v2423 = vrot.slane %v2147, %v2422
    %v2424 = vsel %vm618, %v2423, %v2419
    %v2425 = vlaneseq
    %v2426 = vshrl.u32 %v2425, 7
    %v2427 = vsub.s32 %v620, %v2426
    %v2428 = vrot.slane %v2150, %v2427
    %v2429 = vsel %vm625, %v2428, %v2424
    %v2430 = vlaneseq
    %v2431 = vshrl.u32 %v2430, 7
    %v2432 = vsub.s32 %v627, %v2431
    %v2433 = vrot.slane %v2153, %v2432
    %v2434 = vsel %vm632, %v2433, %v2429
    %v2435 = vlaneseq
    %v2436 = vshrl.u32 %v2435, 7
    %v2437 = vsub.s32 %v634, %v2436
    %v2438 = vrot.slane %v2156, %v2437
    %v2439 = vsel %vm639, %v2438, %v2434
    %v2440 = vlaneseq
    %v2441 = vshrl.u32 %v2440, 7
    %v2442 = vsub.s32 %v641, %v2441
    %v2443 = vrot.slane %v2159, %v2442
    %v2444 = vsel %vm646, %v2443, %v2439
    %v2445 = vlaneseq
    %v2446 = vshrl.u32 %v2445, 7
    %v2447 = vsub.s32 %v538, %v2446
    %v2448 = vrot.slane %v2162, %v2447
    %v2449 = vlaneseq
    %v2450 = vshrl.u32 %v2449, 7
    %v2451 = vsub.s32 %v543, %v2450
    %v2452 = vrot.slane %v2165, %v2451
    %v2453 = vsel %vm548, %v2452, %v2448
    %v2454 = vlaneseq
    %v2455 = vshrl.u32 %v2454, 7
    %v2456 = vsub.s32 %v550, %v2455
    %v2457 = vrot.slane %v2168, %v2456
    %v2458 = vsel %vm555, %v2457, %v2453
    %v2459 = vlaneseq
    %v2460 = vshrl.u32 %v2459, 7
    %v2461 = vsub.s32 %v557, %v2460
    %v2462 = vrot.slane %v2171, %v2461
    %v2463 = vsel %vm562, %v2462, %v2458
    %v2464 = vlaneseq
    %v2465 = vshrl.u32 %v2464, 7
    %v2466 = vsub.s32 %v564, %v2465
    %v2467 = vrot.slane %v2174, %v2466
    %v2468 = vsel %vm569, %v2467, %v2463
    %v2469 = vlaneseq
    %v2470 = vshrl.u32 %v2469, 7
    %v2471 = vsub.s32 %v571, %v2470
    %v2472 = vrot.slane %v2177, %v2471
    %v2473 = vsel %vm576, %v2472, %v2468
    %v2474 = vlaneseq
    %v2475 = vshrl.u32 %v2474, 7
    %v2476 = vsub.s32 %v578, %v2475
    %v2477 = vrot.slane %v2180, %v2476
    %v2478 = vsel %vm583, %v2477, %v2473
    %v2479 = vlaneseq
    %v2480 = vshrl.u32 %v2479, 7
    %v2481 = vsub.s32 %v585, %v2480
    %v2482 = vrot.slane %v2183, %v2481
    %v2483 = vsel %vm590, %v2482, %v2478
    %v2484 = vlaneseq
    %v2485 = vshrl.u32 %v2484, 7
    %v2486 = vsub.s32 %v592, %v2485
    %v2487 = vrot.slane %v2186, %v2486
    %v2488 = vsel %vm597, %v2487, %v2483
    %v2489 = vlaneseq
    %v2490 = vshrl.u32 %v2489, 7
    %v2491 = vsub.s32 %v599, %v2490
    %v2492 = vrot.slane %v2189, %v2491
    %v2493 = vsel %vm604, %v2492, %v2488
    %v2494 = vlaneseq
    %v2495 = vshrl.u32 %v2494, 7
    %v2496 = vsub.s32 %v606, %v2495
    %v2497 = vrot.slane %v2192, %v2496
    %v2498 = vsel %vm611, %v2497, %v2493
    %v2499 = vlaneseq
    %v2500 = vshrl.u32 %v2499, 7
    %v2501 = vsub.s32 %v613, %v2500
    %v2502 = vrot.slane %v2195, %v2501
    %v2503 = vsel %vm618, %v2502, %v2498
    %v2504 = vlaneseq
    %v2505 = vshrl.u32 %v2504, 7
    %v2506 = vsub.s32 %v620, %v2505
    %v2507 = vrot.slane %v2198, %v2506
    %v2508 = vsel %vm625, %v2507, %v2503
    %v2509 = vlaneseq
    %v2510 = vshrl.u32 %v2509, 7
    %v2511 = vsub.s32 %v627, %v2510
    %v2512 = vrot.slane %v2201, %v2511
    %v2513 = vsel %vm632, %v2512, %v2508
    %v2514 = vlaneseq
    %v2515 = vshrl.u32 %v2514, 7
    %v2516 = vsub.s32 %v634, %v2515
    %v2517 = vrot.slane %v2204, %v2516
    %v2518 = vsel %vm639, %v2517, %v2513
    %v2519 = vlaneseq
    %v2520 = vshrl.u32 %v2519, 7
    %v2521 = vsub.s32 %v641, %v2520
    %v2522 = vrot.slane %v2207, %v2521
    %v2523 = vsel %vm646, %v2522, %v2518
    %v2524 = vsel %vm885, %v2444, %v2286
    %v2525 = vsel %vm885, %v2523, %v2365
    %v2528 = vadd.f32 %v1709, %v2524
    %v2529 = vadd.f32 %v1710, %v2525
    %v2530 = vld [vmem:[%s3] sm:$0xff]
    %v2531 = vld [vmem:[%s3 + $0x8] sm:$0xff]
    %v2532 = vld [vmem:[%s3 + $0x10] sm:$0xff]
    %v2533 = vld [vmem:[%s3 + $0x18] sm:$0xff]
    %v2534 = vld [vmem:[%s3 + $0x20] sm:$0xff]
    %v2535 = vld [vmem:[%s3 + $0x28] sm:$0xff]
    %v2536 = vld [vmem:[%s3 + $0x30] sm:$0xff]
    %v2537 = vld [vmem:[%s3 + $0x38] sm:$0xff]
    %v2538 = vld [vmem:[%s3 + $0x40] sm:$0xff]
    %v2539 = vld [vmem:[%s3 + $0x48] sm:$0xff]
    %v2540 = vld [vmem:[%s3 + $0x50] sm:$0xff]
    %v2541 = vld [vmem:[%s3 + $0x58] sm:$0xff]
    %v2542 = vld [vmem:[%s3 + $0x60] sm:$0xff]
    %v2543 = vld [vmem:[%s3 + $0x68] sm:$0xff]
    %v2544 = vld [vmem:[%s3 + $0x70] sm:$0xff]
    %v2545 = vld [vmem:[%s3 + $0x78] sm:$0xff]
    %v2546 = vld [vmem:[%s3 + $0x80] sm:$0xff]
    %v2547 = vld [vmem:[%s3 + $0x88] sm:$0xff]
    %v2548 = vld [vmem:[%s3 + $0x90] sm:$0xff]
    %v2549 = vld [vmem:[%s3 + $0x98] sm:$0xff]
    %v2550 = vld [vmem:[%s3 + $0xa0] sm:$0xff]
    %v2551 = vld [vmem:[%s3 + $0xa8] sm:$0xff]
    %v2552 = vld [vmem:[%s3 + $0xb0] sm:$0xff]
    %v2553 = vld [vmem:[%s3 + $0xb8] sm:$0xff]
    %v2554 = vld [vmem:[%s3 + $0xc0] sm:$0xff]
    %v2555 = vld [vmem:[%s3 + $0xc8] sm:$0xff]
    %v2556 = vld [vmem:[%s3 + $0xd0] sm:$0xff]
    %v2557 = vld [vmem:[%s3 + $0xd8] sm:$0xff]
    %v2558 = vld [vmem:[%s3 + $0xe0] sm:$0xff]
    %v2559 = vld [vmem:[%s3 + $0xe8] sm:$0xff]
    %v2560 = vld [vmem:[%s3 + $0xf0] sm:$0xff]
    %v2561 = vld [vmem:[%s3 + $0xf8] sm:$0xff]
    %v2562 = vld [vmem:[%s4] sm:$0x1]
    %v2564 = vlaneseq
    %v2565 = vshrl.u32 %v2564, 7
    %v2566 = vsub.s32 0, %v2565
    %v2567 = vrot.slane %v2562, %v2566
    %2569 = vmatprep.subr.mxu0 0.0
    %2570 = vmatpush1.msra.mxu0 %v2545
    %2571 = vmatprep.subr.mxu0 0.0
    %2572 = vmatpush1.msra.mxu0 %v2544
    %2573 = vmatprep.subr.mxu0 0.0
    %2574 = vmatpush1.msra.mxu0 %v2543
    %2575 = vmatprep.subr.mxu0 0.0
    %2576 = vmatpush1.msra.mxu0 %v2542
    %2577 = vmatprep.subr.mxu0 0.0
    %2578 = vmatpush1.msra.mxu0 %v2541
    %2579 = vmatprep.subr.mxu0 0.0
    %2580 = vmatpush1.msra.mxu0 %v2540
    %2581 = vmatprep.subr.mxu0 0.0
    %2582 = vmatpush1.msra.mxu0 %v2539
    %2583 = vmatprep.subr.mxu0 0.0
    %2584 = vmatpush1.msra.mxu0 %v2538
    %2585 = vmatprep.subr.mxu0 0.0
    %2586 = vmatpush1.msra.mxu0 %v2537
    %2587 = vmatprep.subr.mxu0 0.0
    %2588 = vmatpush1.msra.mxu0 %v2536
    %2589 = vmatprep.subr.mxu0 0.0
    %2590 = vmatpush1.msra.mxu0 %v2535
    %2591 = vmatprep.subr.mxu0 0.0
    %2592 = vmatpush1.msra.mxu0 %v2534
    %2593 = vmatprep.subr.mxu0 0.0
    %2594 = vmatpush1.msra.mxu0 %v2533
    %2595 = vmatprep.subr.mxu0 0.0
    %2596 = vmatpush1.msra.mxu0 %v2532
    %2597 = vmatprep.subr.mxu0 0.0
    %2598 = vmatpush1.msra.mxu0 %v2531
    %2599 = vmatprep.subr.mxu0 0.0
    %2600 = vmatpush1.msra.mxu0 %v2530
    %2601 = vmatprep.subr.mxu0 0.0
    %2602 = vmatpush2.msra.mxu0 %v2561
    %2603 = vmatprep.subr.mxu0 0.0
    %2604 = vmatpush2.msra.mxu0 %v2560
    %2605 = vmatprep.subr.mxu0 0.0
    %2606 = vmatpush2.msra.mxu0 %v2559
    %2607 = vmatprep.subr.mxu0 0.0
    %2608 = vmatpush2.msra.mxu0 %v2558
    %2609 = vmatprep.subr.mxu0 0.0
    %2610 = vmatpush2.msra.mxu0 %v2557
    %2611 = vmatprep.subr.mxu0 0.0
    %2612 = vmatpush2.msra.mxu0 %v2556
    %2613 = vmatprep.subr.mxu0 0.0
    %2614 = vmatpush2.msra.mxu0 %v2555
    %2615 = vmatprep.subr.mxu0 0.0
    %2616 = vmatpush2.msra.mxu0 %v2554
    %2617 = vmatprep.subr.mxu0 0.0
    %2618 = vmatpush2.msra.mxu0 %v2553
    %2619 = vmatprep.subr.mxu0 0.0
    %2620 = vmatpush2.msra.mxu0 %v2552
    %2621 = vmatprep.subr.mxu0 0.0
    %2622 = vmatpush2.msra.mxu0 %v2551
    %2623 = vmatprep.subr.mxu0 0.0
    %2624 = vmatpush2.msra.mxu0 %v2550
    %2625 = vmatprep.subr.mxu0 0.0
    %2626 = vmatpush2.msra.mxu0 %v2549
    %2627 = vmatprep.subr.mxu0 0.0
    %2628 = vmatpush2.msra.mxu0 %v2548
    %2629 = vmatprep.subr.mxu0 0.0
    %2630 = vmatpush2.msra.mxu0 %v2547
    %2631 = vmatprep.subr.mxu0 0.0
    %2632 = vmatpush2.msra.mxu0 %v2546
    %2633 = vmatprep.mubr.f32.mxu0 %v2529
    %2634 = vmatmul.mubr.f32.gmra.mxu0 %v2528
    %v2635 = vpop.f32.mrf.mxu0
    %v2636 = vadd.f32 %v2567, %v2635
    %v2637 = vpop.f32.mrf.mxu0
    %2638 = vdwg.mxu0
    %v2639 = vxor.u32 %v2636, 2147483648
    %v2640 = vmul.f32 %v2639, 1.442695
    %v2641 = vpow.pop %v2640
    %v2642 = vadd.f32 %v2641, 1.0
    %v2643 = vrcp.pop %v2642
    %v2644 = vmul.f32 1.0, %v2643
    %v2645 = vld [vmem:[%s5] sm:$0xff]
    %v2646 = vld [vmem:[%s5 + $0x8] sm:$0xff]
    %v2647 = vld [vmem:[%s5 + $0x10] sm:$0xff]
    %v2648 = vld [vmem:[%s5 + $0x18] sm:$0xff]
    %v2649 = vld [vmem:[%s5 + $0x20] sm:$0xff]
    %v2650 = vld [vmem:[%s5 + $0x28] sm:$0xff]
    %v2651 = vld [vmem:[%s5 + $0x30] sm:$0xff]
    %v2652 = vld [vmem:[%s5 + $0x38] sm:$0xff]
    %v2653 = vld [vmem:[%s5 + $0x40] sm:$0xff]
    %v2654 = vld [vmem:[%s5 + $0x48] sm:$0xff]
    %v2655 = vld [vmem:[%s5 + $0x50] sm:$0xff]
    %v2656 = vld [vmem:[%s5 + $0x58] sm:$0xff]
    %v2657 = vld [vmem:[%s5 + $0x60] sm:$0xff]
    %v2658 = vld [vmem:[%s5 + $0x68] sm:$0xff]
    %v2659 = vld [vmem:[%s5 + $0x70] sm:$0xff]
    %v2660 = vld [vmem:[%s5 + $0x78] sm:$0xff]
    %v2661 = vld [vmem:[%s6] sm:$0x1]
    %v2663 = vlaneseq
    %v2664 = vshrl.u32 %v2663, 7
    %v2665 = vsub.s32 0, %v2664
    %v2666 = vrot.slane %v2661, %v2665
    %2668 = vmatprep.subr.mxu0 0.0
    %2669 = vmatpush1.msra.mxu0 %v2660
    %2670 = vmatprep.subr.mxu0 0.0
    %2671 = vmatpush1.msra.mxu0 %v2659
    %2672 = vmatprep.subr.mxu0 0.0
    %2673 = vmatpush1.msra.mxu0 %v2658
    %2674 = vmatprep.subr.mxu0 0.0
    %2675 = vmatpush1.msra.mxu0 %v2657
    %2676 = vmatprep.subr.mxu0 0.0
    %2677 = vmatpush1.msra.mxu0 %v2656
    %2678 = vmatprep.subr.mxu0 0.0
    %2679 = vmatpush1.msra.mxu0 %v2655
    %2680 = vmatprep.subr.mxu0 0.0
    %2681 = vmatpush1.msra.mxu0 %v2654
    %2682 = vmatprep.subr.mxu0 0.0
    %2683 = vmatpush1.msra.mxu0 %v2653
    %2684 = vmatprep.subr.mxu0 0.0
    %2685 = vmatpush1.msra.mxu0 %v2652
    %2686 = vmatprep.subr.mxu0 0.0
    %2687 = vmatpush1.msra.mxu0 %v2651
    %2688 = vmatprep.subr.mxu0 0.0
    %2689 = vmatpush1.msra.mxu0 %v2650
    %2690 = vmatprep.subr.mxu0 0.0
    %2691 = vmatpush1.msra.mxu0 %v2649
    %2692 = vmatprep.subr.mxu0 0.0
    %2693 = vmatpush1.msra.mxu0 %v2648
    %2694 = vmatprep.subr.mxu0 0.0
    %2695 = vmatpush1.msra.mxu0 %v2647
    %2696 = vmatprep.subr.mxu0 0.0
    %2697 = vmatpush1.msra.mxu0 %v2646
    %2698 = vmatprep.subr.mxu0 0.0
    %2699 = vmatpush1.msra.mxu0 %v2645
    %2700 = vmatprep.subr.mxu0 0.0
    %2701 = vmatpush2.msra.mxu0 0.0
    %2702 = vmatprep.subr.mxu0 0.0
    %2703 = vmatpush2.msra.mxu0 0.0
    %2704 = vmatprep.subr.mxu0 0.0
    %2705 = vmatpush2.msra.mxu0 0.0
    %2706 = vmatprep.subr.mxu0 0.0
    %2707 = vmatpush2.msra.mxu0 0.0
    %2708 = vmatprep.subr.mxu0 0.0
    %2709 = vmatpush2.msra.mxu0 0.0
    %2710 = vmatprep.subr.mxu0 0.0
    %2711 = vmatpush2.msra.mxu0 0.0
    %2712 = vmatprep.subr.mxu0 0.0
    %2713 = vmatpush2.msra.mxu0 0.0
    %2714 = vmatprep.subr.mxu0 0.0
    %2715 = vmatpush2.msra.mxu0 0.0
    %2716 = vmatprep.subr.mxu0 0.0
    %2717 = vmatpush2.msra.mxu0 0.0
    %2718 = vmatprep.subr.mxu0 0.0
    %2719 = vmatpush2.msra.mxu0 0.0
    %2720 = vmatprep.subr.mxu0 0.0
    %2721 = vmatpush2.msra.mxu0 0.0
    %2722 = vmatprep.subr.mxu0 0.0
    %2723 = vmatpush2.msra.mxu0 0.0
    %2724 = vmatprep.subr.mxu0 0.0
    %2725 = vmatpush2.msra.mxu0 0.0
    %2726 = vmatprep.subr.mxu0 0.0
    %2727 = vmatpush2.msra.mxu0 0.0
    %2728 = vmatprep.subr.mxu0 0.0
    %2729 = vmatpush2.msra.mxu0 0.0
    %2730 = vmatprep.subr.mxu0 0.0
    %2731 = vmatpush2.msra.mxu0 0.0
    %2732 = vmatprep.mubr.f32.mxu0 0.0
    %2733 = vmatmul.mubr.f32.gmra.mxu0 %v2644
    %v2734 = vpop.f32.mrf.mxu0
    %v2735 = vadd.f32 %v2666, %v2734
    %v2736 = vpop.f32.mrf.mxu0
    %2737 = vdwg.mxu0
    %v2738 = vxor.u32 %v2735, 2147483648
    %v2739 = vmul.f32 %v2738, 1.442695
    %v2740 = vpow.pop %v2739
    %v2741 = vadd.f32 %v2740, 1.0
    %v2742 = vrcp.pop %v2741
    %v2743 = vmul.f32 1.0, %v2742
    %v2744 = vmul.f32 %v2743, %v2743
    %vm2745 = vcmask 17408
    %v2746 = vsel %vm2745, %v2744, 0.0
    %2747 = vadd.xlane.f32.xlu0 %v2746
    %v2748 = vpop.xlane.xlu0 %2747
    %v2749 = vmax.f32 %v2748, 1e-24
    %v2750 = vrsqrt.pop %v2749
    %v2751 = vmul.f32 %v2743, %v2750
    %2752 = vst.msk [vmem:[#allocation2] sm:$0x3] %vm2745, %v2751
    // Predicated region
    $region30: #{fc4_forward.3} parent=1 // pred_check
      _
    $region31: #{fc4_forward.3} parent=1 // pred_check_branch
      %2754 = sbr.rel (0) target = $region33
    $region32: #{fc4_forward.3} parent=1 // pred_region
      %s2756 = ssub.s32 32, 32
      %2757 = vsyncadd [#allocation3], %s2756
      %s2759 = sshll.u32 [#allocation2], 4
      %s2760 = int_to_ptr.vmem [resolvable:$true] %s2759
      %2762 = dma.vmem_to_hbm [thread:$0]  %s2760, 32, %s7, [#allocation3]
    $region33: #{fc4_forward.3} parent=1 // pred_fallthru
      _
    // Predicated region
    $region34: #{fc4_forward.3} parent=1 // pred_check
      _
    $region35: #{fc4_forward.3} parent=1 // pred_check_branch
      %2764 = sbr.rel (0) target = $region37
    $region36: #{fc4_forward.3} parent=1 // pred_region
      %2765 = dma.done [#allocation3], 32
    $region37: #{fc4_forward.3} parent=1 // pred_fallthru
      _
    %2766 = vsyncpa [#allocation3], 1

</llo_original>
